<compile_context>
chip_gen: v6e
topology: v6e:2x2x1
jax: 0.10.0
libtpu: 0.0.40
codegen_flags: <defaults>
</compile_context>

<pallas_src>
import functools

import jax
import jax.numpy as jnp
import numpy as np
from jax import lax
from jax.experimental import pallas as pl
from jax.experimental.pallas import tpu as pltpu


# ----------------------------------------------------------------------------
# Phase-major layout of a spatial axis: makes every stride-s access contiguous
# ----------------------------------------------------------------------------
def _phase_layout(n, s):
    """Padded index i' = i + 1 gets phase p = i' % s and q = i' // s.

    Reordering the axis by (phase, q) lets the kernel scatter h1 into a
    phase-split padded scratch and read stride-s conv taps (and the strided
    projection input) back with static contiguous slices only.

    Returns (perm, per_phase) with per_phase[p] = (offset, count, qstart).
    """
    groups = []
    for p in range(s):
        idx = sorted([i for i in range(n) if (i + 1) % s == p],
                     key=lambda i: (i + 1) // s)
        groups.append(idx)
    perm = [i for g in groups for i in g]
    per_phase, off = [], 0
    for g in groups:
        qstart = (g[0] + 1) // s if g else 0
        per_phase.append((off, len(g), qstart))
        off += len(g)
    return perm, per_phase


# ----------------------------------------------------------------------------
# Fused whole-block kernel (one grid step == one image)
# ----------------------------------------------------------------------------
def _make_resblock_kernel(H, W, Cin, Cmid, Cout, s, has_proj,
                          per_phase_h, per_phase_w, dtype):
    Ho = (H - 1) // s + 1
    Wo = (W - 1) // s + 1
    Hq = -(-(H + 2) // s)          # ceil((H+2)/s)
    Wq = -(-(W + 2) // s)
    pr_off = per_phase_h[1 % s][0]  # permuted offset of rows {0, s, 2s, ...}
    pc_off = per_phase_w[1 % s][0]

    def kernel(*refs):
        if has_proj:
            (x_ref, w1_ref, t1_ref, w2_ref, t2_ref, w3_ref, t3_ref,
             wp_ref, tp_ref, o_ref, h1p_ref) = refs
        else:
            (x_ref, w1_ref, t1_ref, w2_ref, t2_ref, w3_ref, t3_ref,
             o_ref, h1p_ref) = refs

        x2d = x_ref[0]                                          # (H*W, Cin)

        # ---- conv1 (1x1) + bn1 + relu (BN folded into w1; f32 accumulate) --
        h1 = jnp.dot(x2d, w1_ref[...], preferred_element_type=jnp.float32)
        h1 = jnp.maximum(h1 + t1_ref[...], 0.0).astype(dtype)   # (H*W, Cmid)
        h1_3d = h1.reshape(H, W, Cmid)

        # ---- scatter h1 into the doubly phase-split padded VMEM scratch ----
        # s*s lane-aligned bulk stores + O(H+W) halo zeroing (no full memset).
        for rp in range(s):
            roff, rcnt, rqs = per_phase_h[rp]
            for cp in range(s):
                coff, ccnt, cqs = per_phase_w[cp]
                g = rp * s + cp
                if rqs > 0:
                    h1p_ref[g, 0:rqs, :, :] = jnp.zeros((rqs, Wq, Cmid), dtype)
                if rqs + rcnt < Hq:
                    h1p_ref[g, rqs + rcnt:Hq, :, :] = \
                        jnp.zeros((Hq - rqs - rcnt, Wq, Cmid), dtype)
                if cqs > 0:
                    h1p_ref[g, :, 0:cqs, :] = jnp.zeros((Hq, cqs, Cmid), dtype)
                if cqs + ccnt < Wq:
                    h1p_ref[g, :, cqs + ccnt:Wq, :] = \
                        jnp.zeros((Hq, Wq - cqs - ccnt, Cmid), dtype)
                h1p_ref[g, rqs:rqs + rcnt, cqs:cqs + ccnt, :] = \
                    h1_3d[roff:roff + rcnt, coff:coff + ccnt, :]

        # ---- conv2 (3x3, stride s) + bn2 + relu: 9 per-tap matmuls ----------
        # Tap-major: every tap read is a contiguous (Ho, Wo, Cmid) slice at
        # lane offset 0; accumulation stays in f32.
        acc = jnp.zeros((Ho * Wo, Cmid), jnp.float32)
        for ky in range(3):
            for kx in range(3):
                g = (ky % s) * s + (kx % s)
                tap = h1p_ref[g, ky // s:ky // s + Ho, kx // s:kx // s + Wo, :]
                acc = acc + jnp.dot(tap.reshape(Ho * Wo, Cmid),
                                    w2_ref[ky * 3 + kx],
                                    preferred_element_type=jnp.float32)
        h2 = jnp.maximum(acc + t2_ref[...], 0.0).astype(dtype)  # (Ho*Wo, Cmid)

        # ---- conv3 (1x1) + bn3 + relu ---------------------------------------
        h3 = jnp.dot(h2, w3_ref[...], preferred_element_type=jnp.float32)
        h3 = jnp.maximum(h3 + t3_ref[...], 0.0)                 # (Ho*Wo, Cout)

        # ---- residual branch -------------------------------------------------
        if has_proj:
            # Phase-major H and W => the strided 1x1 projection input is one
            # contiguous static slice (no copy loop, no scratch).
            x_sub = x2d.reshape(H, W, Cin)[pr_off:pr_off + Ho,
                                           pc_off:pc_off + Wo, :]
            res = jnp.dot(x_sub.reshape(Ho * Wo, Cin), wp_ref[...],
                          preferred_element_type=jnp.float32) + tp_ref[...]
        else:
            res = x2d.astype(jnp.float32)   # identity (Cin == Cout, stride 1)

        # Module semantics: relu(bn3(conv3)) is added to the residual.
        o_ref[0] = (h3 + res).astype(o_ref.dtype)

    return kernel


# ----------------------------------------------------------------------------
# Wrapper: BN folding, layout plumbing, VMEM budget, pallas_call
# ----------------------------------------------------------------------------
def _fold_conv_bn(w, bias, bn, dtype, eps=1e-5):
    """Fold conv bias + eval-mode BN into matmul weights (cast after folding)
    and an f32 per-output-channel shift."""
    gamma, beta, mean, var = bn
    scale = gamma / jnp.sqrt(var + eps)
    w_f = (w.astype(jnp.float32) * scale).astype(dtype)
    t = ((bias - mean) * scale + beta).astype(jnp.float32)[None, :]
    return w_f, t


def _padded_bytes(shape, itemsize):
    """Rough VMEM footprint of an array after (8,128) minor-dim tiling."""
    if len(shape) < 2:
        return int(np.prod(shape)) * itemsize
    lead = int(np.prod(shape[:-2])) if len(shape) > 2 else 1
    sub = -(-shape[-2] // 8) * 8
    lane = -(-shape[-1] // 128) * 128
    return lead * sub * lane * itemsize


def resblock_forward(x_nchw, params, mid_stride, dtype=jnp.float32):
    """Pallas implementation of Resblock.forward.  Input/output are NCHW."""
    s = int(mid_stride)
    N, Cin, H, W = x_nchw.shape
    Cmid = params["w1"].shape[0]
    Cout = params["w3"].shape[0]
    has_proj = params.get("wp") is not None
    if not has_proj:
        assert Cin == Cout and s == 1, \
            "identity residual requires Cin == 4*out_channels and stride == 1"
    assert s == 1 or (H % s == 0 and W % s == 0), \
        "H and W must be divisible by mid_stride"

    Ho = (H - 1) // s + 1
    Wo = (W - 1) // s + 1
    Hq = -(-(H + 2) // s)
    Wq = -(-(W + 2) // s)
    isz = jnp.dtype(dtype).itemsize

    # ---- fold conv-bias + BatchNorm into matmul weights / f32 shifts -------
    w1, t1 = _fold_conv_bn(params["w1"][:, :, 0, 0].T, params["b1"],
                           params["bn1"], dtype)
    w2m = jnp.transpose(params["w2"], (2, 3, 1, 0)).reshape(9, Cmid, Cmid)
    w2, t2 = _fold_conv_bn(w2m, params["b2"], params["bn2"], dtype)
    w3, t3 = _fold_conv_bn(params["w3"][:, :, 0, 0].T, params["b3"],
                           params["bn3"], dtype)

    # ---- NCHW -> NHWC with H and W both permuted to phase-major ------------
    row_perm, per_phase_h = _phase_layout(H, s)
    col_perm, per_phase_w = _phase_layout(W, s)
    x = jnp.transpose(x_nchw, (0, 2, 3, 1))
    if s > 1:
        x = x[:, np.asarray(row_perm, dtype=np.int32), :, :]
        x = x[:, :, np.asarray(col_perm, dtype=np.int32), :]
    x2d = x.reshape(N, H * W, Cin).astype(dtype)

    args = [x2d, w1, t1, w2, t2, w3, t3]
    in_specs = [
        pl.BlockSpec((1, H * W, Cin), lambda n: (n, 0, 0)),
        pl.BlockSpec((Cin, Cmid), lambda n: (0, 0)),
        pl.BlockSpec((1, Cmid), lambda n: (0, 0)),
        pl.BlockSpec((9, Cmid, Cmid), lambda n: (0, 0, 0)),
        pl.BlockSpec((1, Cmid), lambda n: (0, 0)),
        pl.BlockSpec((Cmid, Cout), lambda n: (0, 0)),
        pl.BlockSpec((1, Cout), lambda n: (0, 0)),
    ]
    flops = 2 * N * (H * W * Cin * Cmid
                     + Ho * Wo * 9 * Cmid * Cmid
                     + Ho * Wo * Cmid * Cout)
    if has_proj:
        wp, tp = _fold_conv_bn(params["wp"][:, :, 0, 0].T, params["bp"],
                               params["bnp"], dtype)
        args += [wp, tp]
        in_specs += [pl.BlockSpec((Cin, Cout), lambda n: (0, 0)),
                     pl.BlockSpec((1, Cout), lambda n: (0, 0))]
        flops += 2 * N * Ho * Wo * Cin * Cout

    scratch_shapes = [pltpu.VMEM((s * s, Hq, Wq, Cmid), dtype)]

    # ---- explicit VMEM budget (double-buffered blocks + scratch + temps) ---
    pipeline_bytes = 2 * (sum(_padded_bytes(a.shape, a.dtype.itemsize)
                              for a in args)
                          + _padded_bytes((1, Ho * Wo, Cout), isz))
    scratch_bytes = _padded_bytes((s * s, Hq, Wq, Cmid), isz)
    temp_bytes = 4 * (H * W * max(Cmid, 128)
                      + 3 * Ho * Wo * max(Cmid, 128)
                      + 2 * Ho * Wo * max(Cout, 128)
                      + Ho * Wo * max(Cin, 128))
    vmem_budget = int(min(64 * 2**20,
                          max(32 * 2**20,
                              2 * (pipeline_bytes + scratch_bytes + temp_bytes))))

    bytes_accessed = (int(np.prod(x2d.shape)) * isz
                      + N * Ho * Wo * Cout * isz
                      + sum(int(np.prod(a.shape)) * a.dtype.itemsize
                            for a in args[1:]))

    kernel = _make_resblock_kernel(H, W, Cin, Cmid, Cout, s, has_proj,
                                   per_phase_h, per_phase_w, dtype)

    out2d = pl.pallas_call(
        kernel,
        out_shape=jax.ShapeDtypeStruct((N, Ho * Wo, Cout), dtype),
        grid=(N,),
        in_specs=in_specs,
        out_specs=pl.BlockSpec((1, Ho * Wo, Cout), lambda n: (n, 0, 0)),
        scratch_shapes=scratch_shapes,
        compiler_params=pltpu.CompilerParams(
            dimension_semantics=("parallel",),
            vmem_limit_bytes=vmem_budget),
        cost_estimate=pl.CostEstimate(
            flops=flops, transcendentals=0, bytes_accessed=bytes_accessed),
    )(*args)

    out = out2d.reshape(N, Ho, Wo, Cout)
    return jnp.transpose(out, (0, 3, 1, 2))              # NHWC -> NCHW


# ----------------------------------------------------------------------------
# Pure-JAX reference (NCHW, lax.conv) for correctness checking
# ----------------------------------------------------------------------------
def _bn_ref(z, bn, eps=1e-5):
    gamma, beta, mean, var = bn
    shp = (1, -1, 1, 1)
    return (z - mean.reshape(shp)) / jnp.sqrt(var.reshape(shp) + eps) \
        * gamma.reshape(shp) + beta.reshape(shp)


def resblock_reference(x, params, mid_stride):
    dn = ("NCHW", "OIHW", "NCHW")
    conv = functools.partial(lax.conv_general_dilated, dimension_numbers=dn)
    b = lambda v: v.reshape(1, -1, 1, 1)

    h = conv(x, params["w1"], (1, 1), [(0, 0), (0, 0)]) + b(params["b1"])
    h = jax.nn.relu(_bn_ref(h, params["bn1"]))
    h = conv(h, params["w2"], (mid_stride, mid_stride),
             [(1, 1), (1, 1)]) + b(params["b2"])
    h = jax.nn.relu(_bn_ref(h, params["bn2"]))
    h = conv(h, params["w3"], (1, 1), [(0, 0), (0, 0)]) + b(params["b3"])
    h = jax.nn.relu(_bn_ref(h, params["bn3"]))
    if params.get("wp") is not None:
        res = conv(x, params["wp"], (mid_stride, mid_stride),
                   [(0, 0), (0, 0)]) + b(params["bp"])
        res = _bn_ref(res, params["bnp"])
    else:
        res = x
    return res + h


# ----------------------------------------------------------------------------
def make_params(key, in_channels, out_channels, mid_stride):
    Cmid = out_channels
    Cout = 4 * out_channels
    ks = jax.random.split(key, 16)

    def bn_params(k, c):
        k1, k2, k3, k4 = jax.random.split(k, 4)
        gamma = 1.0 + 0.1 * jax.random.normal(k1, (c,), jnp.float32)
        beta = 0.1 * jax.random.normal(k2, (c,), jnp.float32)
        mean = 0.1 * jax.random.normal(k3, (c,), jnp.float32)
        var = 1.0 + 0.1 * jax.random.uniform(k4, (c,), jnp.float32)
        return (gamma, beta, mean, var)

    params = {
        "w1": 0.2 * jax.random.normal(ks[0], (Cmid, in_channels, 1, 1), jnp.float32),
        "b1": 0.1 * jax.random.normal(ks[1], (Cmid,), jnp.float32),
        "bn1": bn_params(ks[2], Cmid),
        "w2": 0.2 * jax.random.normal(ks[3], (Cmid, Cmid, 3, 3), jnp.float32),
        "b2": 0.1 * jax.random.normal(ks[4], (Cmid,), jnp.float32),
        "bn2": bn_params(ks[5], Cmid),
        "w3": 0.2 * jax.random.normal(ks[6], (Cout, Cmid, 1, 1), jnp.float32),
        "b3": 0.1 * jax.random.normal(ks[7], (Cout,), jnp.float32),
        "bn3": bn_params(ks[8], Cout),
    }
    if in_channels != Cout or mid_stride != 1:
        params["wp"] = 0.2 * jax.random.normal(
            ks[9], (Cout, in_channels, 1, 1), jnp.float32)
        params["bp"] = 0.1 * jax.random.normal(ks[10], (Cout,), jnp.float32)
        params["bnp"] = bn_params(ks[11], Cout)
    else:
        params["wp"] = None
    return params


if __name__ == "__main__":
    key = jax.random.PRNGKey(0)
    kx, kp, kx2, kp2 = jax.random.split(key, 4)

    # --- Test 1: stride-2 bottleneck with projection (main path) ------------
    N, Cin, H, W = 2, 4, 16, 16
    out_channels = 4          # -> output channels = 4 * 4 = 16
    mid_stride = 2            # exercises the projection branch and stride path

    x = jax.random.normal(kx, (N, Cin, H, W), jnp.float32)
    params = make_params(kp, Cin, out_channels, mid_stride)
    ref = jax.block_until_ready(resblock_reference(x, params, mid_stride))

    # f32 path: tight numerical check.
    out_f32 = jax.block_until_ready(
        resblock_forward(x, params, mid_stride, dtype=jnp.float32))
    np.testing.assert_allclose(np.asarray(out_f32), np.asarray(ref),
                               rtol=1e-3, atol=1e-3)

    # bf16-at-HBM-boundary path (perf config): looser tolerance.
    out_bf16 = jax.block_until_ready(
        resblock_forward(x, params, mid_stride, dtype=jnp.bfloat16))
    np.testing.assert_allclose(np.asarray(out_bf16).astype(np.float32),
                               np.asarray(ref), rtol=5e-2, atol=5e-2)

    # --- Test 2: identity residual (stride 1, Cin == 4*out_channels) --------
    Cin2 = 16
    x2 = jax.random.normal(kx2, (N, Cin2, H, W), jnp.float32)
    params2 = make_params(kp2, Cin2, 4, 1)          # wp is None -> identity
    ref2 = jax.block_until_ready(resblock_reference(x2, params2, 1))
    out2 = jax.block_until_ready(
        resblock_forward(x2, params2, 1, dtype=jnp.float32))
    np.testing.assert_allclose(np.asarray(out2), np.asarray(ref2),
                               rtol=1e-3, atol=1e-3)

    print("KERNEL_OK")
</pallas_src>

<mosaic_0001>
module attributes {stable_mosaic.version = 11 : i64} {
  func.func @kernel(%arg0: i32, %arg1: memref<1x256x4xf32, #tpu.memory_space<vmem>>, %arg2: memref<4x4xf32, #tpu.memory_space<vmem>>, %arg3: memref<1x4xf32, #tpu.memory_space<vmem>>, %arg4: memref<9x4x4xf32, #tpu.memory_space<vmem>>, %arg5: memref<1x4xf32, #tpu.memory_space<vmem>>, %arg6: memref<4x16xf32, #tpu.memory_space<vmem>>, %arg7: memref<1x16xf32, #tpu.memory_space<vmem>>, %arg8: memref<4x16xf32, #tpu.memory_space<vmem>>, %arg9: memref<1x16xf32, #tpu.memory_space<vmem>>, %arg10: memref<1x64x16xf32, #tpu.memory_space<vmem>>, %arg11: memref<4x9x9x4xf32, #tpu.memory_space<vmem>>) attributes {dimension_semantics = [#tpu.dimension_semantics<parallel>], iteration_bounds = array<i64: 2>, scalar_prefetch = 0 : i64, scratch_operands = 1 : i64, tpu.core_type = #tpu.core_type<tc>, window_params = [{transform_indices = @transform_0, window_bounds = array<i64: 1, 256, 4>}, {pipeline_mode = #tpu.pipeline_mode<synchronous>, transform_indices = @transform_1, window_bounds = array<i64: 4, 4>}, {pipeline_mode = #tpu.pipeline_mode<synchronous>, transform_indices = @transform_2, window_bounds = array<i64: 1, 4>}, {pipeline_mode = #tpu.pipeline_mode<synchronous>, transform_indices = @transform_3, window_bounds = array<i64: 9, 4, 4>}, {pipeline_mode = #tpu.pipeline_mode<synchronous>, transform_indices = @transform_4, window_bounds = array<i64: 1, 4>}, {pipeline_mode = #tpu.pipeline_mode<synchronous>, transform_indices = @transform_5, window_bounds = array<i64: 4, 16>}, {pipeline_mode = #tpu.pipeline_mode<synchronous>, transform_indices = @transform_6, window_bounds = array<i64: 1, 16>}, {pipeline_mode = #tpu.pipeline_mode<synchronous>, transform_indices = @transform_7, window_bounds = array<i64: 4, 16>}, {pipeline_mode = #tpu.pipeline_mode<synchronous>, transform_indices = @transform_8, window_bounds = array<i64: 1, 16>}, {transform_indices = @transform_9, window_bounds = array<i64: 1, 64, 16>}]} {
    %c0 = arith.constant 0 : index
    %c0_0 = arith.constant 0 : index
    %c0_1 = arith.constant 0 : index
    %0 = vector.load %arg1[%c0, %c0_0, %c0_1] : memref<1x256x4xf32, #tpu.memory_space<vmem>>, vector<1x256x4xf32>
    %1 = vector.shape_cast %0 : vector<1x256x4xf32> to vector<256x4xf32>
    %c0_2 = arith.constant 0 : index
    %c0_3 = arith.constant 0 : index
    %2 = vector.load %arg2[%c0_2, %c0_3] : memref<4x4xf32, #tpu.memory_space<vmem>>, vector<4x4xf32>
    %cst = arith.constant dense<0.000000e+00> : vector<256x4xf32>
    %3 = tpu.matmul %1, %2, %cst {dimension_numbers = #tpu.dot_dimension_numbers<[1], [0], [0], [1], [0, 0, 1, 1], [], []>} : vector<256x4xf32>, vector<4x4xf32>, vector<256x4xf32> -> vector<256x4xf32>
    %c0_4 = arith.constant 0 : index
    %c0_5 = arith.constant 0 : index
    %4 = vector.load %arg3[%c0_4, %c0_5] : memref<1x4xf32, #tpu.memory_space<vmem>>, vector<1x4xf32>
    %5 = vector.broadcast %4 : vector<1x4xf32> to vector<256x4xf32>
    %6 = arith.addf %3, %5 : vector<256x4xf32>
    %cst_6 = arith.constant 0.000000e+00 : f32
    %7 = vector.broadcast %cst_6 : f32 to vector<256x4xf32>
    %8 = arith.maximumf %6, %7 : vector<256x4xf32>
    %9 = vector.shape_cast %8 : vector<256x4xf32> to vector<16x16x4xf32>
    %cst_7 = arith.constant 0.000000e+00 : f32
    %10 = vector.broadcast %cst_7 : f32 to vector<1x9x4xf32>
    %c0_8 = arith.constant 0 : index
    %c0_9 = arith.constant 0 : index
    %c0_10 = arith.constant 0 : index
    %c0_11 = arith.constant 0 : index
    %11 = vector.load %arg11[%c0_8, %c0_9, %c0_10, %c0_11] : memref<4x9x9x4xf32, #tpu.memory_space<vmem>>, vector<1x1x9x4xf32>
    %12 = vector.shape_cast %11 : vector<1x1x9x4xf32> to vector<1x9x4xf32>
    %13 = vector.shape_cast %10 : vector<1x9x4xf32> to vector<1x1x9x4xf32>
    tpu.vector_store %arg11[%c0_8, %c0_9, %c0_10, %c0_11], %13 {strides = array<i32>} : memref<4x9x9x4xf32, #tpu.memory_space<vmem>>, vector<1x1x9x4xf32>,
    %cst_12 = arith.constant 0.000000e+00 : f32
    %14 = vector.broadcast %cst_12 : f32 to vector<9x1x4xf32>
    %c0_13 = arith.constant 0 : index
    %c0_14 = arith.constant 0 : index
    %c0_15 = arith.constant 0 : index
    %c0_16 = arith.constant 0 : index
    %15 = vector.load %arg11[%c0_13, %c0_14, %c0_15, %c0_16] : memref<4x9x9x4xf32, #tpu.memory_space<vmem>>, vector<1x9x1x4xf32>
    %16 = vector.shape_cast %15 : vector<1x9x1x4xf32> to vector<9x1x4xf32>
    %17 = vector.shape_cast %14 : vector<9x1x4xf32> to vector<1x9x1x4xf32>
    tpu.vector_store %arg11[%c0_13, %c0_14, %c0_15, %c0_16], %17 {strides = array<i32>} : memref<4x9x9x4xf32, #tpu.memory_space<vmem>>, vector<1x9x1x4xf32>,
    %18 = vector.extract_strided_slice %9 {offsets = [0, 0, 0], sizes = [8, 8, 4], strides = [1, 1, 1]} : vector<16x16x4xf32> to vector<8x8x4xf32>
    %c0_17 = arith.constant 0 : index
    %c1 = arith.constant 1 : index
    %c1_18 = arith.constant 1 : index
    %c0_19 = arith.constant 0 : index
    %19 = vector.load %arg11[%c0_17, %c1, %c1_18, %c0_19] : memref<4x9x9x4xf32, #tpu.memory_space<vmem>>, vector<1x8x8x4xf32>
    %20 = vector.shape_cast %19 : vector<1x8x8x4xf32> to vector<8x8x4xf32>
    %21 = vector.shape_cast %18 : vector<8x8x4xf32> to vector<1x8x8x4xf32>
    tpu.vector_store %arg11[%c0_17, %c1, %c1_18, %c0_19], %21 {strides = array<i32>} : memref<4x9x9x4xf32, #tpu.memory_space<vmem>>, vector<1x8x8x4xf32>,
    %cst_20 = arith.constant 0.000000e+00 : f32
    %22 = vector.broadcast %cst_20 : f32 to vector<1x9x4xf32>
    %c1_21 = arith.constant 1 : index
    %c0_22 = arith.constant 0 : index
    %c0_23 = arith.constant 0 : index
    %c0_24 = arith.constant 0 : index
    %23 = vector.load %arg11[%c1_21, %c0_22, %c0_23, %c0_24] : memref<4x9x9x4xf32, #tpu.memory_space<vmem>>, vector<1x1x9x4xf32>
    %24 = vector.shape_cast %23 : vector<1x1x9x4xf32> to vector<1x9x4xf32>
    %25 = vector.shape_cast %22 : vector<1x9x4xf32> to vector<1x1x9x4xf32>
    tpu.vector_store %arg11[%c1_21, %c0_22, %c0_23, %c0_24], %25 {strides = array<i32>} : memref<4x9x9x4xf32, #tpu.memory_space<vmem>>, vector<1x1x9x4xf32>,
    %cst_25 = arith.constant 0.000000e+00 : f32
    %26 = vector.broadcast %cst_25 : f32 to vector<9x1x4xf32>
    %c1_26 = arith.constant 1 : index
    %c0_27 = arith.constant 0 : index
    %c8 = arith.constant 8 : index
    %c0_28 = arith.constant 0 : index
    %27 = vector.load %arg11[%c1_26, %c0_27, %c8, %c0_28] : memref<4x9x9x4xf32, #tpu.memory_space<vmem>>, vector<1x9x1x4xf32>
    %28 = vector.shape_cast %27 : vector<1x9x1x4xf32> to vector<9x1x4xf32>
    %29 = vector.shape_cast %26 : vector<9x1x4xf32> to vector<1x9x1x4xf32>
    tpu.vector_store %arg11[%c1_26, %c0_27, %c8, %c0_28], %29 {strides = array<i32>} : memref<4x9x9x4xf32, #tpu.memory_space<vmem>>, vector<1x9x1x4xf32>,
    %30 = vector.extract_strided_slice %9 {offsets = [0, 8, 0], sizes = [8, 8, 4], strides = [1, 1, 1]} : vector<16x16x4xf32> to vector<8x8x4xf32>
    %c1_29 = arith.constant 1 : index
    %c1_30 = arith.constant 1 : index
    %c0_31 = arith.constant 0 : index
    %c0_32 = arith.constant 0 : index
    %31 = vector.load %arg11[%c1_29, %c1_30, %c0_31, %c0_32] : memref<4x9x9x4xf32, #tpu.memory_space<vmem>>, vector<1x8x8x4xf32>
    %32 = vector.shape_cast %31 : vector<1x8x8x4xf32> to vector<8x8x4xf32>
    %33 = vector.shape_cast %30 : vector<8x8x4xf32> to vector<1x8x8x4xf32>
    tpu.vector_store %arg11[%c1_29, %c1_30, %c0_31, %c0_32], %33 {strides = array<i32>} : memref<4x9x9x4xf32, #tpu.memory_space<vmem>>, vector<1x8x8x4xf32>,
    %cst_33 = arith.constant 0.000000e+00 : f32
    %34 = vector.broadcast %cst_33 : f32 to vector<1x9x4xf32>
    %c2 = arith.constant 2 : index
    %c8_34 = arith.constant 8 : index
    %c0_35 = arith.constant 0 : index
    %c0_36 = arith.constant 0 : index
    %35 = vector.load %arg11[%c2, %c8_34, %c0_35, %c0_36] : memref<4x9x9x4xf32, #tpu.memory_space<vmem>>, vector<1x1x9x4xf32>
    %36 = vector.shape_cast %35 : vector<1x1x9x4xf32> to vector<1x9x4xf32>
    %37 = vector.shape_cast %34 : vector<1x9x4xf32> to vector<1x1x9x4xf32>
    tpu.vector_store %arg11[%c2, %c8_34, %c0_35, %c0_36], %37 {strides = array<i32>} : memref<4x9x9x4xf32, #tpu.memory_space<vmem>>, vector<1x1x9x4xf32>,
    %cst_37 = arith.constant 0.000000e+00 : f32
    %38 = vector.broadcast %cst_37 : f32 to vector<9x1x4xf32>
    %c2_38 = arith.constant 2 : index
    %c0_39 = arith.constant 0 : index
    %c0_40 = arith.constant 0 : index
    %c0_41 = arith.constant 0 : index
    %39 = vector.load %arg11[%c2_38, %c0_39, %c0_40, %c0_41] : memref<4x9x9x4xf32, #tpu.memory_space<vmem>>, vector<1x9x1x4xf32>
    %40 = vector.shape_cast %39 : vector<1x9x1x4xf32> to vector<9x1x4xf32>
    %41 = vector.shape_cast %38 : vector<9x1x4xf32> to vector<1x9x1x4xf32>
    tpu.vector_store %arg11[%c2_38, %c0_39, %c0_40, %c0_41], %41 {strides = array<i32>} : memref<4x9x9x4xf32, #tpu.memory_space<vmem>>, vector<1x9x1x4xf32>,
    %42 = vector.extract_strided_slice %9 {offsets = [8, 0, 0], sizes = [8, 8, 4], strides = [1, 1, 1]} : vector<16x16x4xf32> to vector<8x8x4xf32>
    %c2_42 = arith.constant 2 : index
    %c0_43 = arith.constant 0 : index
    %c1_44 = arith.constant 1 : index
    %c0_45 = arith.constant 0 : index
    %43 = vector.load %arg11[%c2_42, %c0_43, %c1_44, %c0_45] : memref<4x9x9x4xf32, #tpu.memory_space<vmem>>, vector<1x8x8x4xf32>
    %44 = vector.shape_cast %43 : vector<1x8x8x4xf32> to vector<8x8x4xf32>
    %45 = vector.shape_cast %42 : vector<8x8x4xf32> to vector<1x8x8x4xf32>
    tpu.vector_store %arg11[%c2_42, %c0_43, %c1_44, %c0_45], %45 {strides = array<i32>} : memref<4x9x9x4xf32, #tpu.memory_space<vmem>>, vector<1x8x8x4xf32>,
    %cst_46 = arith.constant 0.000000e+00 : f32
    %46 = vector.broadcast %cst_46 : f32 to vector<1x9x4xf32>
    %c3 = arith.constant 3 : index
    %c8_47 = arith.constant 8 : index
    %c0_48 = arith.constant 0 : index
    %c0_49 = arith.constant 0 : index
    %47 = vector.load %arg11[%c3, %c8_47, %c0_48, %c0_49] : memref<4x9x9x4xf32, #tpu.memory_space<vmem>>, vector<1x1x9x4xf32>
    %48 = vector.shape_cast %47 : vector<1x1x9x4xf32> to vector<1x9x4xf32>
    %49 = vector.shape_cast %46 : vector<1x9x4xf32> to vector<1x1x9x4xf32>
    tpu.vector_store %arg11[%c3, %c8_47, %c0_48, %c0_49], %49 {strides = array<i32>} : memref<4x9x9x4xf32, #tpu.memory_space<vmem>>, vector<1x1x9x4xf32>,
    %cst_50 = arith.constant 0.000000e+00 : f32
    %50 = vector.broadcast %cst_50 : f32 to vector<9x1x4xf32>
    %c3_51 = arith.constant 3 : index
    %c0_52 = arith.constant 0 : index
    %c8_53 = arith.constant 8 : index
    %c0_54 = arith.constant 0 : index
    %51 = vector.load %arg11[%c3_51, %c0_52, %c8_53, %c0_54] : memref<4x9x9x4xf32, #tpu.memory_space<vmem>>, vector<1x9x1x4xf32>
    %52 = vector.shape_cast %51 : vector<1x9x1x4xf32> to vector<9x1x4xf32>
    %53 = vector.shape_cast %50 : vector<9x1x4xf32> to vector<1x9x1x4xf32>
    tpu.vector_store %arg11[%c3_51, %c0_52, %c8_53, %c0_54], %53 {strides = array<i32>} : memref<4x9x9x4xf32, #tpu.memory_space<vmem>>, vector<1x9x1x4xf32>,
    %54 = vector.extract_strided_slice %9 {offsets = [8, 8, 0], sizes = [8, 8, 4], strides = [1, 1, 1]} : vector<16x16x4xf32> to vector<8x8x4xf32>
    %c3_55 = arith.constant 3 : index
    %c0_56 = arith.constant 0 : index
    %c0_57 = arith.constant 0 : index
    %c0_58 = arith.constant 0 : index
    %55 = vector.load %arg11[%c3_55, %c0_56, %c0_57, %c0_58] : memref<4x9x9x4xf32, #tpu.memory_space<vmem>>, vector<1x8x8x4xf32>
    %56 = vector.shape_cast %55 : vector<1x8x8x4xf32> to vector<8x8x4xf32>
    %57 = vector.shape_cast %54 : vector<8x8x4xf32> to vector<1x8x8x4xf32>
    tpu.vector_store %arg11[%c3_55, %c0_56, %c0_57, %c0_58], %57 {strides = array<i32>} : memref<4x9x9x4xf32, #tpu.memory_space<vmem>>, vector<1x8x8x4xf32>,
    %cst_59 = arith.constant 0.000000e+00 : f32
    %58 = vector.broadcast %cst_59 : f32 to vector<64x4xf32>
    %c0_60 = arith.constant 0 : index
    %c0_61 = arith.constant 0 : index
    %c0_62 = arith.constant 0 : index
    %c0_63 = arith.constant 0 : index
    %59 = vector.load %arg11[%c0_60, %c0_61, %c0_62, %c0_63] : memref<4x9x9x4xf32, #tpu.memory_space<vmem>>, vector<1x8x8x4xf32>
    %60 = vector.shape_cast %59 : vector<1x8x8x4xf32> to vector<8x8x4xf32>
    %61 = vector.shape_cast %60 : vector<8x8x4xf32> to vector<64x4xf32>
    %c0_64 = arith.constant 0 : index
    %c0_65 = arith.constant 0 : index
    %c0_66 = arith.constant 0 : index
    %62 = vector.load %arg4[%c0_64, %c0_65, %c0_66] : memref<9x4x4xf32, #tpu.memory_space<vmem>>, vector<1x4x4xf32>
    %63 = vector.shape_cast %62 : vector<1x4x4xf32> to vector<4x4xf32>
    %cst_67 = arith.constant dense<0.000000e+00> : vector<64x4xf32>
    %64 = tpu.matmul %61, %63, %cst_67 {dimension_numbers = #tpu.dot_dimension_numbers<[1], [0], [0], [1], [0, 0, 1, 1], [], []>} : vector<64x4xf32>, vector<4x4xf32>, vector<64x4xf32> -> vector<64x4xf32>
    %65 = arith.addf %58, %64 : vector<64x4xf32>
    %c1_68 = arith.constant 1 : index
    %c0_69 = arith.constant 0 : index
    %c0_70 = arith.constant 0 : index
    %c0_71 = arith.constant 0 : index
    %66 = vector.load %arg11[%c1_68, %c0_69, %c0_70, %c0_71] : memref<4x9x9x4xf32, #tpu.memory_space<vmem>>, vector<1x8x8x4xf32>
    %67 = vector.shape_cast %66 : vector<1x8x8x4xf32> to vector<8x8x4xf32>
    %68 = vector.shape_cast %67 : vector<8x8x4xf32> to vector<64x4xf32>
    %c1_72 = arith.constant 1 : index
    %c0_73 = arith.constant 0 : index
    %c0_74 = arith.constant 0 : index
    %69 = vector.load %arg4[%c1_72, %c0_73, %c0_74] : memref<9x4x4xf32, #tpu.memory_space<vmem>>, vector<1x4x4xf32>
    %70 = vector.shape_cast %69 : vector<1x4x4xf32> to vector<4x4xf32>
    %cst_75 = arith.constant dense<0.000000e+00> : vector<64x4xf32>
    %71 = tpu.matmul %68, %70, %cst_75 {dimension_numbers = #tpu.dot_dimension_numbers<[1], [0], [0], [1], [0, 0, 1, 1], [], []>} : vector<64x4xf32>, vector<4x4xf32>, vector<64x4xf32> -> vector<64x4xf32>
    %72 = arith.addf %65, %71 : vector<64x4xf32>
    %c0_76 = arith.constant 0 : index
    %c0_77 = arith.constant 0 : index
    %c1_78 = arith.constant 1 : index
    %c0_79 = arith.constant 0 : index
    %73 = vector.load %arg11[%c0_76, %c0_77, %c1_78, %c0_79] : memref<4x9x9x4xf32, #tpu.memory_space<vmem>>, vector<1x8x8x4xf32>
    %74 = vector.shape_cast %73 : vector<1x8x8x4xf32> to vector<8x8x4xf32>
    %75 = vector.shape_cast %74 : vector<8x8x4xf32> to vector<64x4xf32>
    %c2_80 = arith.constant 2 : index
    %c0_81 = arith.constant 0 : index
    %c0_82 = arith.constant 0 : index
    %76 = vector.load %arg4[%c2_80, %c0_81, %c0_82] : memref<9x4x4xf32, #tpu.memory_space<vmem>>, vector<1x4x4xf32>
    %77 = vector.shape_cast %76 : vector<1x4x4xf32> to vector<4x4xf32>
    %cst_83 = arith.constant dense<0.000000e+00> : vector<64x4xf32>
    %78 = tpu.matmul %75, %77, %cst_83 {dimension_numbers = #tpu.dot_dimension_numbers<[1], [0], [0], [1], [0, 0, 1, 1], [], []>} : vector<64x4xf32>, vector<4x4xf32>, vector<64x4xf32> -> vector<64x4xf32>
    %79 = arith.addf %72, %78 : vector<64x4xf32>
    %c2_84 = arith.constant 2 : index
    %c0_85 = arith.constant 0 : index
    %c0_86 = arith.constant 0 : index
    %c0_87 = arith.constant 0 : index
    %80 = vector.load %arg11[%c2_84, %c0_85, %c0_86, %c0_87] : memref<4x9x9x4xf32, #tpu.memory_space<vmem>>, vector<1x8x8x4xf32>
    %81 = vector.shape_cast %80 : vector<1x8x8x4xf32> to vector<8x8x4xf32>
    %82 = vector.shape_cast %81 : vector<8x8x4xf32> to vector<64x4xf32>
    %c3_88 = arith.constant 3 : index
    %c0_89 = arith.constant 0 : index
    %c0_90 = arith.constant 0 : index
    %83 = vector.load %arg4[%c3_88, %c0_89, %c0_90] : memref<9x4x4xf32, #tpu.memory_space<vmem>>, vector<1x4x4xf32>
    %84 = vector.shape_cast %83 : vector<1x4x4xf32> to vector<4x4xf32>
    %cst_91 = arith.constant dense<0.000000e+00> : vector<64x4xf32>
    %85 = tpu.matmul %82, %84, %cst_91 {dimension_numbers = #tpu.dot_dimension_numbers<[1], [0], [0], [1], [0, 0, 1, 1], [], []>} : vector<64x4xf32>, vector<4x4xf32>, vector<64x4xf32> -> vector<64x4xf32>
    %86 = arith.addf %79, %85 : vector<64x4xf32>
    %c3_92 = arith.constant 3 : index
    %c0_93 = arith.constant 0 : index
    %c0_94 = arith.constant 0 : index
    %c0_95 = arith.constant 0 : index
    %87 = vector.load %arg11[%c3_92, %c0_93, %c0_94, %c0_95] : memref<4x9x9x4xf32, #tpu.memory_space<vmem>>, vector<1x8x8x4xf32>
    %88 = vector.shape_cast %87 : vector<1x8x8x4xf32> to vector<8x8x4xf32>
    %89 = vector.shape_cast %88 : vector<8x8x4xf32> to vector<64x4xf32>
    %c4 = arith.constant 4 : index
    %c0_96 = arith.constant 0 : index
    %c0_97 = arith.constant 0 : index
    %90 = vector.load %arg4[%c4, %c0_96, %c0_97] : memref<9x4x4xf32, #tpu.memory_space<vmem>>, vector<1x4x4xf32>
    %91 = vector.shape_cast %90 : vector<1x4x4xf32> to vector<4x4xf32>
    %cst_98 = arith.constant dense<0.000000e+00> : vector<64x4xf32>
    %92 = tpu.matmul %89, %91, %cst_98 {dimension_numbers = #tpu.dot_dimension_numbers<[1], [0], [0], [1], [0, 0, 1, 1], [], []>} : vector<64x4xf32>, vector<4x4xf32>, vector<64x4xf32> -> vector<64x4xf32>
    %93 = arith.addf %86, %92 : vector<64x4xf32>
    %c2_99 = arith.constant 2 : index
    %c0_100 = arith.constant 0 : index
    %c1_101 = arith.constant 1 : index
    %c0_102 = arith.constant 0 : index
    %94 = vector.load %arg11[%c2_99, %c0_100, %c1_101, %c0_102] : memref<4x9x9x4xf32, #tpu.memory_space<vmem>>, vector<1x8x8x4xf32>
    %95 = vector.shape_cast %94 : vector<1x8x8x4xf32> to vector<8x8x4xf32>
    %96 = vector.shape_cast %95 : vector<8x8x4xf32> to vector<64x4xf32>
    %c5 = arith.constant 5 : index
    %c0_103 = arith.constant 0 : index
    %c0_104 = arith.constant 0 : index
    %97 = vector.load %arg4[%c5, %c0_103, %c0_104] : memref<9x4x4xf32, #tpu.memory_space<vmem>>, vector<1x4x4xf32>
    %98 = vector.shape_cast %97 : vector<1x4x4xf32> to vector<4x4xf32>
    %cst_105 = arith.constant dense<0.000000e+00> : vector<64x4xf32>
    %99 = tpu.matmul %96, %98, %cst_105 {dimension_numbers = #tpu.dot_dimension_numbers<[1], [0], [0], [1], [0, 0, 1, 1], [], []>} : vector<64x4xf32>, vector<4x4xf32>, vector<64x4xf32> -> vector<64x4xf32>
    %100 = arith.addf %93, %99 : vector<64x4xf32>
    %c0_106 = arith.constant 0 : index
    %c1_107 = arith.constant 1 : index
    %c0_108 = arith.constant 0 : index
    %c0_109 = arith.constant 0 : index
    %101 = vector.load %arg11[%c0_106, %c1_107, %c0_108, %c0_109] : memref<4x9x9x4xf32, #tpu.memory_space<vmem>>, vector<1x8x8x4xf32>
    %102 = vector.shape_cast %101 : vector<1x8x8x4xf32> to vector<8x8x4xf32>
    %103 = vector.shape_cast %102 : vector<8x8x4xf32> to vector<64x4xf32>
    %c6 = arith.constant 6 : index
    %c0_110 = arith.constant 0 : index
    %c0_111 = arith.constant 0 : index
    %104 = vector.load %arg4[%c6, %c0_110, %c0_111] : memref<9x4x4xf32, #tpu.memory_space<vmem>>, vector<1x4x4xf32>
    %105 = vector.shape_cast %104 : vector<1x4x4xf32> to vector<4x4xf32>
    %cst_112 = arith.constant dense<0.000000e+00> : vector<64x4xf32>
    %106 = tpu.matmul %103, %105, %cst_112 {dimension_numbers = #tpu.dot_dimension_numbers<[1], [0], [0], [1], [0, 0, 1, 1], [], []>} : vector<64x4xf32>, vector<4x4xf32>, vector<64x4xf32> -> vector<64x4xf32>
    %107 = arith.addf %100, %106 : vector<64x4xf32>
    %c1_113 = arith.constant 1 : index
    %c1_114 = arith.constant 1 : index
    %c0_115 = arith.constant 0 : index
    %c0_116 = arith.constant 0 : index
    %108 = vector.load %arg11[%c1_113, %c1_114, %c0_115, %c0_116] : memref<4x9x9x4xf32, #tpu.memory_space<vmem>>, vector<1x8x8x4xf32>
    %109 = vector.shape_cast %108 : vector<1x8x8x4xf32> to vector<8x8x4xf32>
    %110 = vector.shape_cast %109 : vector<8x8x4xf32> to vector<64x4xf32>
    %c7 = arith.constant 7 : index
    %c0_117 = arith.constant 0 : index
    %c0_118 = arith.constant 0 : index
    %111 = vector.load %arg4[%c7, %c0_117, %c0_118] : memref<9x4x4xf32, #tpu.memory_space<vmem>>, vector<1x4x4xf32>
    %112 = vector.shape_cast %111 : vector<1x4x4xf32> to vector<4x4xf32>
    %cst_119 = arith.constant dense<0.000000e+00> : vector<64x4xf32>
    %113 = tpu.matmul %110, %112, %cst_119 {dimension_numbers = #tpu.dot_dimension_numbers<[1], [0], [0], [1], [0, 0, 1, 1], [], []>} : vector<64x4xf32>, vector<4x4xf32>, vector<64x4xf32> -> vector<64x4xf32>
    %114 = arith.addf %107, %113 : vector<64x4xf32>
    %c0_120 = arith.constant 0 : index
    %c1_121 = arith.constant 1 : index
    %c1_122 = arith.constant 1 : index
    %c0_123 = arith.constant 0 : index
    %115 = vector.load %arg11[%c0_120, %c1_121, %c1_122, %c0_123] : memref<4x9x9x4xf32, #tpu.memory_space<vmem>>, vector<1x8x8x4xf32>
    %116 = vector.shape_cast %115 : vector<1x8x8x4xf32> to vector<8x8x4xf32>
    %117 = vector.shape_cast %116 : vector<8x8x4xf32> to vector<64x4xf32>
    %c8_124 = arith.constant 8 : index
    %c0_125 = arith.constant 0 : index
    %c0_126 = arith.constant 0 : index
    %118 = vector.load %arg4[%c8_124, %c0_125, %c0_126] : memref<9x4x4xf32, #tpu.memory_space<vmem>>, vector<1x4x4xf32>
    %119 = vector.shape_cast %118 : vector<1x4x4xf32> to vector<4x4xf32>
    %cst_127 = arith.constant dense<0.000000e+00> : vector<64x4xf32>
    %120 = tpu.matmul %117, %119, %cst_127 {dimension_numbers = #tpu.dot_dimension_numbers<[1], [0], [0], [1], [0, 0, 1, 1], [], []>} : vector<64x4xf32>, vector<4x4xf32>, vector<64x4xf32> -> vector<64x4xf32>
    %121 = arith.addf %114, %120 : vector<64x4xf32>
    %c0_128 = arith.constant 0 : index
    %c0_129 = arith.constant 0 : index
    %122 = vector.load %arg5[%c0_128, %c0_129] : memref<1x4xf32, #tpu.memory_space<vmem>>, vector<1x4xf32>
    %123 = vector.broadcast %122 : vector<1x4xf32> to vector<64x4xf32>
    %124 = arith.addf %121, %123 : vector<64x4xf32>
    %cst_130 = arith.constant 0.000000e+00 : f32
    %125 = vector.broadcast %cst_130 : f32 to vector<64x4xf32>
    %126 = arith.maximumf %124, %125 : vector<64x4xf32>
    %c0_131 = arith.constant 0 : index
    %c0_132 = arith.constant 0 : index
    %127 = vector.load %arg6[%c0_131, %c0_132] : memref<4x16xf32, #tpu.memory_space<vmem>>, vector<4x16xf32>
    %cst_133 = arith.constant dense<0.000000e+00> : vector<64x16xf32>
    %128 = tpu.matmul %126, %127, %cst_133 {dimension_numbers = #tpu.dot_dimension_numbers<[1], [0], [0], [1], [0, 0, 1, 1], [], []>} : vector<64x4xf32>, vector<4x16xf32>, vector<64x16xf32> -> vector<64x16xf32>
    %c0_134 = arith.constant 0 : index
    %c0_135 = arith.constant 0 : index
    %129 = vector.load %arg7[%c0_134, %c0_135] : memref<1x16xf32, #tpu.memory_space<vmem>>, vector<1x16xf32>
    %130 = vector.broadcast %129 : vector<1x16xf32> to vector<64x16xf32>
    %131 = arith.addf %128, %130 : vector<64x16xf32>
    %cst_136 = arith.constant 0.000000e+00 : f32
    %132 = vector.broadcast %cst_136 : f32 to vector<64x16xf32>
    %133 = arith.maximumf %131, %132 : vector<64x16xf32>
    %134 = vector.shape_cast %1 : vector<256x4xf32> to vector<16x16x4xf32>
    %135 = vector.extract_strided_slice %134 {offsets = [8, 8, 0], sizes = [8, 8, 4], strides = [1, 1, 1]} : vector<16x16x4xf32> to vector<8x8x4xf32>
    %136 = vector.shape_cast %135 : vector<8x8x4xf32> to vector<64x4xf32>
    %c0_137 = arith.constant 0 : index
    %c0_138 = arith.constant 0 : index
    %137 = vector.load %arg8[%c0_137, %c0_138] : memref<4x16xf32, #tpu.memory_space<vmem>>, vector<4x16xf32>
    %cst_139 = arith.constant dense<0.000000e+00> : vector<64x16xf32>
    %138 = tpu.matmul %136, %137, %cst_139 {dimension_numbers = #tpu.dot_dimension_numbers<[1], [0], [0], [1], [0, 0, 1, 1], [], []>} : vector<64x4xf32>, vector<4x16xf32>, vector<64x16xf32> -> vector<64x16xf32>
    %c0_140 = arith.constant 0 : index
    %c0_141 = arith.constant 0 : index
    %139 = vector.load %arg9[%c0_140, %c0_141] : memref<1x16xf32, #tpu.memory_space<vmem>>, vector<1x16xf32>
    %140 = vector.broadcast %139 : vector<1x16xf32> to vector<64x16xf32>
    %141 = arith.addf %138, %140 : vector<64x16xf32>
    %142 = arith.addf %133, %141 : vector<64x16xf32>
    %c0_142 = arith.constant 0 : index
    %c0_143 = arith.constant 0 : index
    %c0_144 = arith.constant 0 : index
    %143 = vector.load %arg10[%c0_142, %c0_143, %c0_144] : memref<1x64x16xf32, #tpu.memory_space<vmem>>, vector<1x64x16xf32>
    %144 = vector.shape_cast %143 : vector<1x64x16xf32> to vector<64x16xf32>
    %145 = vector.shape_cast %142 : vector<64x16xf32> to vector<1x64x16xf32>
    tpu.vector_store %arg10[%c0_142, %c0_143, %c0_144], %145 {strides = array<i32>} : memref<1x64x16xf32, #tpu.memory_space<vmem>>, vector<1x64x16xf32>,
    return
  }
  func.func @transform_0(%arg0: i32) -> (i32, i32, i32) {
    %c0_i32 = arith.constant 0 : i32
    %c0_i32_0 = arith.constant 0 : i32
    %c0_i32_1 = arith.constant 0 : i32
    return %arg0, %c0_i32, %c0_i32_0 : i32, i32, i32
  }
  func.func @transform_1(%arg0: i32) -> (i32, i32) {
    %c0_i32 = arith.constant 0 : i32
    %c0_i32_0 = arith.constant 0 : i32
    %c0_i32_1 = arith.constant 0 : i32
    return %c0_i32, %c0_i32_0 : i32, i32
  }
  func.func @transform_2(%arg0: i32) -> (i32, i32) {
    %c0_i32 = arith.constant 0 : i32
    %c0_i32_0 = arith.constant 0 : i32
    %c0_i32_1 = arith.constant 0 : i32
    return %c0_i32, %c0_i32_0 : i32, i32
  }
  func.func @transform_3(%arg0: i32) -> (i32, i32, i32) {
    %c0_i32 = arith.constant 0 : i32
    %c0_i32_0 = arith.constant 0 : i32
    %c0_i32_1 = arith.constant 0 : i32
    %c0_i32_2 = arith.constant 0 : i32
    return %c0_i32, %c0_i32_0, %c0_i32_1 : i32, i32, i32
  }
  func.func @transform_4(%arg0: i32) -> (i32, i32) {
    %c0_i32 = arith.constant 0 : i32
    %c0_i32_0 = arith.constant 0 : i32
    %c0_i32_1 = arith.constant 0 : i32
    return %c0_i32, %c0_i32_0 : i32, i32
  }
  func.func @transform_5(%arg0: i32) -> (i32, i32) {
    %c0_i32 = arith.constant 0 : i32
    %c0_i32_0 = arith.constant 0 : i32
    %c0_i32_1 = arith.constant 0 : i32
    return %c0_i32, %c0_i32_0 : i32, i32
  }
  func.func @transform_6(%arg0: i32) -> (i32, i32) {
    %c0_i32 = arith.constant 0 : i32
    %c0_i32_0 = arith.constant 0 : i32
    %c0_i32_1 = arith.constant 0 : i32
    return %c0_i32, %c0_i32_0 : i32, i32
  }
  func.func @transform_7(%arg0: i32) -> (i32, i32) {
    %c0_i32 = arith.constant 0 : i32
    %c0_i32_0 = arith.constant 0 : i32
    %c0_i32_1 = arith.constant 0 : i32
    return %c0_i32, %c0_i32_0 : i32, i32
  }
  func.func @transform_8(%arg0: i32) -> (i32, i32) {
    %c0_i32 = arith.constant 0 : i32
    %c0_i32_0 = arith.constant 0 : i32
    %c0_i32_1 = arith.constant 0 : i32
    return %c0_i32, %c0_i32_0 : i32, i32
  }
  func.func @transform_9(%arg0: i32) -> (i32, i32, i32) {
    %c0_i32 = arith.constant 0 : i32
    %c0_i32_0 = arith.constant 0 : i32
    %c0_i32_1 = arith.constant 0 : i32
    return %arg0, %c0_i32, %c0_i32_0 : i32, i32, i32
  }
}

</mosaic_0001>

<llo_original>
// kernel: tpu_custom_call.1
$region0: #{tpu_custom_call.1}
  #allocation0 [shape = 'u32[]', space=smem, size = 0x4, offset = 0x4, fixed_abs, tag = 'smem constant byte address 0x4 - core index']
  #allocation1 [shape = 'u32[144,128]{1,0:T(1,128)}', space=vmem, size = 0x12000, scoped, tag = 'internal scratch']
  #allocation2 [shape = 'f32[4,9,9,4]{3,2,1,0:T(8,128)}', space=vmem, size = 0x48000, scoped, tag = 'scratch operand']
  %s0 = inlined_call_operand.vmem [shape: f32[2,256,4], index: 0, kind: input, shape index: {}]
  %s1 = inlined_call_operand.vmem [shape: f32[4,4], index: 1, kind: input, shape index: {}]
  %s2 = inlined_call_operand.vmem [shape: f32[1,4], index: 2, kind: input, shape index: {}]
  %s3 = inlined_call_operand.vmem [shape: f32[9,4,4], index: 3, kind: input, shape index: {}]
  %s4 = inlined_call_operand.vmem [shape: f32[1,4], index: 4, kind: input, shape index: {}]
  %s5 = inlined_call_operand.vmem [shape: f32[4,16], index: 5, kind: input, shape index: {}]
  %s6 = inlined_call_operand.vmem [shape: f32[1,16], index: 6, kind: input, shape index: {}]
  %s7 = inlined_call_operand.vmem [shape: f32[4,16], index: 7, kind: input, shape index: {}]
  %s8 = inlined_call_operand.vmem [shape: f32[1,16], index: 8, kind: input, shape index: {}]
  %s9 = inlined_call_operand.vmem [shape: f32[2,64,16], index: 9, kind: output, shape index: {}]
  %s10 = sld [smem:[#allocation0]]
  $region69: #{tpu_custom_call.1} parent=0
    _
  %s12 = ssub.s32 1, %s10
  %s13 = scalar_select 0, %s12, %s10
  loop: start=0, step=1, limit=4
  $region2: #{tpu_custom_call.1} parent=0 // loop_pre_header
    _
  $region3: #{tpu_custom_call.1} parent=0 // loop_header
    %s15 = sphi 0, %s19
    %p16 = scmp.ge.s32.totalorder %s15, 4
    %s25 = sphi 0, %s27
    %s28 = sphi 0, %s25
    %s29 = sphi 0, %s28
    %s45 = sphi 0, %s29
    %s49 = sphi 0, %s49
    %s51 = sphi 0, %s49
    %s52 = sphi 0, %s51
    %s66 = sphi 0, %s52
    %s70 = sphi 0, %s70
    %s72 = sphi 0, %s70
    %s73 = sphi 0, %s72
    %s87 = sphi 0, %s73
    %s91 = sphi 0, %s91
    %s93 = sphi 0, %s91
    %s94 = sphi 0, %s93
    %s108 = sphi 0, %s94
    %s112 = sphi 0, %s112
    %s114 = sphi 0, %s112
    %s115 = sphi 0, %s114
    %s129 = sphi 0, %s115
    %s133 = sphi 0, %s133
    %s135 = sphi 0, %s133
    %s136 = sphi 0, %s135
    %s150 = sphi 0, %s136
    %s154 = sphi 0, %s154
    %s156 = sphi 0, %s154
    %s157 = sphi 0, %s156
    %s171 = sphi 0, %s157
    %s175 = sphi 0, %s175
    %s177 = sphi 0, %s175
    %s178 = sphi 0, %s177
    %s192 = sphi 0, %s178
    %s196 = sphi 0, %s196
    %s198 = sphi 0, %s196
    %s199 = sphi 0, %s198
    %s213 = sphi 0, %s199
    %s219 = sphi 0, %s221
    %s222 = sphi 0, %s219
    %s223 = sphi 0, %s222
    %s239 = sphi 0, %s223
  $region4: #{tpu_custom_call.1} parent=0 // loop_header_branch
    %18 = sbr.rel (%p16) target = $region8
  $region5: #{tpu_custom_call.1} parent=0 // loop_body
    %s20 = ssub.s32 %s15, 1
    %s21 = ssub.s32 %s15, 2
    %s22 = sadd.s32 %s15, 1
    %s23 = ssub.s32 %s15, %s22
    %p24 = scmp.eq.s32.totalorder %s23, 0
    %s26 = sadd.s32 %s25, 1
    %s27 = scalar_select %p24, %s25, %s26
    %p30 = pneg %p24
    %p31 = scmp.eq.s32.totalorder %s15, 1
    %p32 = por %p30, %p31
    %p33 = scmp.ne.s32.totalorder %s25, %s28
    %p34 = scmp.eq.s32.totalorder %s15, 0
    %p35 = por %p33, %p34
    %p36 = scmp.ne.s32.totalorder %s25, %s28
    %p37 = scmp.eq.s32.totalorder %s20, 1
    %p38 = por %p36, %p37
    %p39 = scmp.ne.s32.totalorder %s28, %s29
    %p40 = scmp.eq.s32.totalorder %s20, 0
    %p41 = por %p39, %p40
    %p42 = scmp.ne.s32.totalorder %s28, %s29
    %p43 = scmp.eq.s32.totalorder %s21, 1
    %p44 = por %p42, %p43
    %p46 = scmp.ne.s32.totalorder %s29, %s45
    %p47 = scmp.eq.s32.totalorder %s21, 0
    %p48 = por %p46, %p47
    %s50 = sadd.s32 %s49, 1
    %p53 = scmp.eq.s32.totalorder %s15, 1
    %p54 = scmp.ne.s32.totalorder %s49, %s51
    %p55 = scmp.eq.s32.totalorder %s15, 0
    %p56 = por %p54, %p55
    %p57 = scmp.ne.s32.totalorder %s49, %s51
    %p58 = scmp.eq.s32.totalorder %s20, 1
    %p59 = por %p57, %p58
    %p60 = scmp.ne.s32.totalorder %s51, %s52
    %p61 = scmp.eq.s32.totalorder %s20, 0
    %p62 = por %p60, %p61
    %p63 = scmp.ne.s32.totalorder %s51, %s52
    %p64 = scmp.eq.s32.totalorder %s21, 1
    %p65 = por %p63, %p64
    %p67 = scmp.ne.s32.totalorder %s52, %s66
    %p68 = scmp.eq.s32.totalorder %s21, 0
    %p69 = por %p67, %p68
    %s71 = sadd.s32 %s70, 1
    %p74 = scmp.eq.s32.totalorder %s15, 1
    %p75 = scmp.ne.s32.totalorder %s70, %s72
    %p76 = scmp.eq.s32.totalorder %s15, 0
    %p77 = por %p75, %p76
    %p78 = scmp.ne.s32.totalorder %s70, %s72
    %p79 = scmp.eq.s32.totalorder %s20, 1
    %p80 = por %p78, %p79
    %p81 = scmp.ne.s32.totalorder %s72, %s73
    %p82 = scmp.eq.s32.totalorder %s20, 0
    %p83 = por %p81, %p82
    %p84 = scmp.ne.s32.totalorder %s72, %s73
    %p85 = scmp.eq.s32.totalorder %s21, 1
    %p86 = por %p84, %p85
    %p88 = scmp.ne.s32.totalorder %s73, %s87
    %p89 = scmp.eq.s32.totalorder %s21, 0
    %p90 = por %p88, %p89
    %s92 = sadd.s32 %s91, 1
    %p95 = scmp.eq.s32.totalorder %s15, 1
    %p96 = scmp.ne.s32.totalorder %s91, %s93
    %p97 = scmp.eq.s32.totalorder %s15, 0
    %p98 = por %p96, %p97
    %p99 = scmp.ne.s32.totalorder %s91, %s93
    %p100 = scmp.eq.s32.totalorder %s20, 1
    %p101 = por %p99, %p100
    %p102 = scmp.ne.s32.totalorder %s93, %s94
    %p103 = scmp.eq.s32.totalorder %s20, 0
    %p104 = por %p102, %p103
    %p105 = scmp.ne.s32.totalorder %s93, %s94
    %p106 = scmp.eq.s32.totalorder %s21, 1
    %p107 = por %p105, %p106
    %p109 = scmp.ne.s32.totalorder %s94, %s108
    %p110 = scmp.eq.s32.totalorder %s21, 0
    %p111 = por %p109, %p110
    %s113 = sadd.s32 %s112, 1
    %p116 = scmp.eq.s32.totalorder %s15, 1
    %p117 = scmp.ne.s32.totalorder %s112, %s114
    %p118 = scmp.eq.s32.totalorder %s15, 0
    %p119 = por %p117, %p118
    %p120 = scmp.ne.s32.totalorder %s112, %s114
    %p121 = scmp.eq.s32.totalorder %s20, 1
    %p122 = por %p120, %p121
    %p123 = scmp.ne.s32.totalorder %s114, %s115
    %p124 = scmp.eq.s32.totalorder %s20, 0
    %p125 = por %p123, %p124
    %p126 = scmp.ne.s32.totalorder %s114, %s115
    %p127 = scmp.eq.s32.totalorder %s21, 1
    %p128 = por %p126, %p127
    %p130 = scmp.ne.s32.totalorder %s115, %s129
    %p131 = scmp.eq.s32.totalorder %s21, 0
    %p132 = por %p130, %p131
    %s134 = sadd.s32 %s133, 1
    %p137 = scmp.eq.s32.totalorder %s15, 1
    %p138 = scmp.ne.s32.totalorder %s133, %s135
    %p139 = scmp.eq.s32.totalorder %s15, 0
    %p140 = por %p138, %p139
    %p141 = scmp.ne.s32.totalorder %s133, %s135
    %p142 = scmp.eq.s32.totalorder %s20, 1
    %p143 = por %p141, %p142
    %p144 = scmp.ne.s32.totalorder %s135, %s136
    %p145 = scmp.eq.s32.totalorder %s20, 0
    %p146 = por %p144, %p145
    %p147 = scmp.ne.s32.totalorder %s135, %s136
    %p148 = scmp.eq.s32.totalorder %s21, 1
    %p149 = por %p147, %p148
    %p151 = scmp.ne.s32.totalorder %s136, %s150
    %p152 = scmp.eq.s32.totalorder %s21, 0
    %p153 = por %p151, %p152
    %s155 = sadd.s32 %s154, 1
    %p158 = scmp.eq.s32.totalorder %s15, 1
    %p159 = scmp.ne.s32.totalorder %s154, %s156
    %p160 = scmp.eq.s32.totalorder %s15, 0
    %p161 = por %p159, %p160
    %p162 = scmp.ne.s32.totalorder %s154, %s156
    %p163 = scmp.eq.s32.totalorder %s20, 1
    %p164 = por %p162, %p163
    %p165 = scmp.ne.s32.totalorder %s156, %s157
    %p166 = scmp.eq.s32.totalorder %s20, 0
    %p167 = por %p165, %p166
    %p168 = scmp.ne.s32.totalorder %s156, %s157
    %p169 = scmp.eq.s32.totalorder %s21, 1
    %p170 = por %p168, %p169
    %p172 = scmp.ne.s32.totalorder %s157, %s171
    %p173 = scmp.eq.s32.totalorder %s21, 0
    %p174 = por %p172, %p173
    %s176 = sadd.s32 %s175, 1
    %p179 = scmp.eq.s32.totalorder %s15, 1
    %p180 = scmp.ne.s32.totalorder %s175, %s177
    %p181 = scmp.eq.s32.totalorder %s15, 0
    %p182 = por %p180, %p181
    %p183 = scmp.ne.s32.totalorder %s175, %s177
    %p184 = scmp.eq.s32.totalorder %s20, 1
    %p185 = por %p183, %p184
    %p186 = scmp.ne.s32.totalorder %s177, %s178
    %p187 = scmp.eq.s32.totalorder %s20, 0
    %p188 = por %p186, %p187
    %p189 = scmp.ne.s32.totalorder %s177, %s178
    %p190 = scmp.eq.s32.totalorder %s21, 1
    %p191 = por %p189, %p190
    %p193 = scmp.ne.s32.totalorder %s178, %s192
    %p194 = scmp.eq.s32.totalorder %s21, 0
    %p195 = por %p193, %p194
    %s197 = sadd.s32 %s196, 1
    %p200 = scmp.eq.s32.totalorder %s15, 1
    %p201 = scmp.ne.s32.totalorder %s196, %s198
    %p202 = scmp.eq.s32.totalorder %s15, 0
    %p203 = por %p201, %p202
    %p204 = scmp.ne.s32.totalorder %s196, %s198
    %p205 = scmp.eq.s32.totalorder %s20, 1
    %p206 = por %p204, %p205
    %p207 = scmp.ne.s32.totalorder %s198, %s199
    %p208 = scmp.eq.s32.totalorder %s20, 0
    %p209 = por %p207, %p208
    %p210 = scmp.ne.s32.totalorder %s198, %s199
    %p211 = scmp.eq.s32.totalorder %s21, 1
    %p212 = por %p210, %p211
    %p214 = scmp.ne.s32.totalorder %s199, %s213
    %p215 = scmp.eq.s32.totalorder %s21, 0
    %p216 = por %p214, %p215
    %s217 = ssub.s32 %s15, %s22
    %p218 = scmp.eq.s32.totalorder %s217, 0
    %s220 = sadd.s32 %s219, 1
    %s221 = scalar_select %p218, %s219, %s220
    %p224 = pneg %p218
    %p225 = scmp.eq.s32.totalorder %s15, 1
    %p226 = por %p224, %p225
    %p227 = scmp.ne.s32.totalorder %s219, %s222
    %p228 = scmp.eq.s32.totalorder %s15, 0
    %p229 = por %p227, %p228
    %p230 = scmp.ne.s32.totalorder %s219, %s222
    %p231 = scmp.eq.s32.totalorder %s20, 1
    %p232 = por %p230, %p231
    %p233 = scmp.ne.s32.totalorder %s222, %s223
    %p234 = scmp.eq.s32.totalorder %s20, 0
    %p235 = por %p233, %p234
    %p236 = scmp.ne.s32.totalorder %s222, %s223
    %p237 = scmp.eq.s32.totalorder %s21, 1
    %p238 = por %p236, %p237
    %p240 = scmp.ne.s32.totalorder %s223, %s239
    %p241 = scmp.eq.s32.totalorder %s21, 0
    %p242 = por %p240, %p241
    %p243 = scmp.le.s32.totalorder 1, %s15
    %p244 = scmp.lt.s32.totalorder %s15, 3
    %p245 = pnand %p243, %p244
    %p246 = pneg %p245
    // Predicated region
    $region9: #{tpu_custom_call.1} parent=5 // pred_check
      _
    $region10: #{tpu_custom_call.1} parent=5 // pred_check_branch
      %248 = sbr.rel (%p245) target = $region12
    $region11: #{tpu_custom_call.1} parent=5 // pred_region
      %s249 = ssub.s32 %s15, 1
      // Predicated region
      $region13: #{tpu_custom_call.1} parent=11 // pred_check
        %p250 = pneg %p62
      $region14: #{tpu_custom_call.1} parent=11 // pred_check_branch
        %252 = sbr.rel (%p250) target = $region16
      $region15: #{tpu_custom_call.1} parent=11 // pred_region
        _
      $region16: #{tpu_custom_call.1} parent=11 // pred_fallthru
        _
      // Predicated region
      $region17: #{tpu_custom_call.1} parent=11 // pred_check
        %p253 = pneg %p83
      $region18: #{tpu_custom_call.1} parent=11 // pred_check_branch
        %255 = sbr.rel (%p253) target = $region20
      $region19: #{tpu_custom_call.1} parent=11 // pred_region
        _
      $region20: #{tpu_custom_call.1} parent=11 // pred_fallthru
        _
      // Predicated region
      $region21: #{tpu_custom_call.1} parent=11 // pred_check
        %p256 = pneg %p104
      $region22: #{tpu_custom_call.1} parent=11 // pred_check_branch
        %258 = sbr.rel (%p256) target = $region24
      $region23: #{tpu_custom_call.1} parent=11 // pred_region
        _
      $region24: #{tpu_custom_call.1} parent=11 // pred_fallthru
        _
      // Predicated region
      $region25: #{tpu_custom_call.1} parent=11 // pred_check
        %p259 = pneg %p125
      $region26: #{tpu_custom_call.1} parent=11 // pred_check_branch
        %261 = sbr.rel (%p259) target = $region28
      $region27: #{tpu_custom_call.1} parent=11 // pred_region
        _
      $region28: #{tpu_custom_call.1} parent=11 // pred_fallthru
        _
      // Predicated region
      $region29: #{tpu_custom_call.1} parent=11 // pred_check
        %p262 = pneg %p146
      $region30: #{tpu_custom_call.1} parent=11 // pred_check_branch
        %264 = sbr.rel (%p262) target = $region32
      $region31: #{tpu_custom_call.1} parent=11 // pred_region
        _
      $region32: #{tpu_custom_call.1} parent=11 // pred_fallthru
        _
      // Predicated region
      $region33: #{tpu_custom_call.1} parent=11 // pred_check
        %p265 = pneg %p167
      $region34: #{tpu_custom_call.1} parent=11 // pred_check_branch
        %267 = sbr.rel (%p265) target = $region36
      $region35: #{tpu_custom_call.1} parent=11 // pred_region
        _
      $region36: #{tpu_custom_call.1} parent=11 // pred_fallthru
        _
      // Predicated region
      $region37: #{tpu_custom_call.1} parent=11 // pred_check
        %p268 = pneg %p188
      $region38: #{tpu_custom_call.1} parent=11 // pred_check_branch
        %270 = sbr.rel (%p268) target = $region40
      $region39: #{tpu_custom_call.1} parent=11 // pred_region
        _
      $region40: #{tpu_custom_call.1} parent=11 // pred_fallthru
        _
      // Predicated region
      $region41: #{tpu_custom_call.1} parent=11 // pred_check
        %p271 = pneg %p209
      $region42: #{tpu_custom_call.1} parent=11 // pred_check_branch
        %273 = sbr.rel (%p271) target = $region44
      $region43: #{tpu_custom_call.1} parent=11 // pred_region
        _
      $region44: #{tpu_custom_call.1} parent=11 // pred_fallthru
        _
    $region12: #{tpu_custom_call.1} parent=5 // pred_fallthru
      _
    %p274 = scmp.lt.s32.totalorder %s15, 2
    // Predicated region
    $region45: #{tpu_custom_call.1} parent=5 // pred_check
      %p275 = pneg %p274
    $region46: #{tpu_custom_call.1} parent=5 // pred_check_branch
      %277 = sbr.rel (%p275) target = $region48
    $region47: #{tpu_custom_call.1} parent=5 // pred_region
      // Predicated region
      $region49: #{tpu_custom_call.1} parent=47 // pred_check
        %p278 = pneg %p35
      $region50: #{tpu_custom_call.1} parent=47 // pred_check_branch
        %280 = sbr.rel (%p278) target = $region52
      $region51: #{tpu_custom_call.1} parent=47 // pred_region
        %p281 = scmp.lt.s32.totalorder %s15, 1
        %s282 = scalar_select %p281, %s15, 1
        %s283 = smul.addr %s282, 32
        %s284 = smul.addr %s283, 8
        %s285 = scalar_lea.vmem %s0, %s284
      $region52: #{tpu_custom_call.1} parent=47 // pred_fallthru
        _
    $region48: #{tpu_custom_call.1} parent=5 // pred_fallthru
      _
    %p286 = scmp.le.s32.totalorder 1, %s15
    %p287 = scmp.lt.s32.totalorder %s15, 3
    %p288 = pnand %p286, %p287
    %p289 = pneg %p288
    // Predicated region
    $region53: #{tpu_custom_call.1} parent=5 // pred_check
      _
    $region54: #{tpu_custom_call.1} parent=5 // pred_check_branch
      %291 = sbr.rel (%p288) target = $region56
    $region55: #{tpu_custom_call.1} parent=5 // pred_region
      %s292 = ssub.s32 %s15, 1
      %p293 = scmp.lt.s32.totalorder %s20, 1
      %s294 = scalar_select %p293, %s20, 1
      %s295 = smul.addr %s294, 32
      %s296 = smul.addr %s295, 8
      %s297 = scalar_lea.vmem %s0, %s296
      %p298 = pneg %p41
      %p299 = pneg %p38
      %p300 = pneg %p62
      %p301 = pneg %p59
      %p302 = pneg %p83
      %p303 = pneg %p80
      %p304 = pneg %p104
      %p305 = pneg %p101
      %p306 = pneg %p125
      %p307 = pneg %p122
      %p308 = pneg %p146
      %p309 = pneg %p143
      %p310 = pneg %p167
      %p311 = pneg %p164
      %p312 = pneg %p188
      %p313 = pneg %p185
      %p314 = pneg %p209
      %p315 = pneg %p206
      %p316 = pneg %p235
      %p317 = pneg %p232
      %p318 = scmp.lt.s32.totalorder %s20, 1
      %s319 = scalar_select %p318, %s20, 1
      %s320 = smul.addr %s319, 8
      %s321 = smul.addr %s320, 8
      %s322 = scalar_lea.vmem %s9, %s321
      %p323 = scmp.lt.s32.totalorder %s20, 1
      %s324 = scalar_select %p323, %s20, 1
      %s325 = smul.addr %s324, 32
      %s326 = smul.addr %s325, 8
      %s327 = scalar_lea.vmem %s0, %s326
      %p328 = scmp.lt.s32.totalorder %s20, 1
      %s329 = scalar_select %p328, %s20, 1
      %s330 = smul.addr %s329, 8
      %s331 = smul.addr %s330, 8
      %s332 = scalar_lea.vmem %s9, %s331
      %v333 = vld [vmem:[%s327] sm:$0xff]
      %v334 = vld [vmem:[%s327 + $0x8] sm:$0xff]
      %v335 = vld [vmem:[%s327 + $0x10] sm:$0xff]
      %v336 = vld [vmem:[%s327 + $0x18] sm:$0xff]
      %v337 = vld [vmem:[%s327 + $0x20] sm:$0xff]
      %v338 = vld [vmem:[%s327 + $0x28] sm:$0xff]
      %v339 = vld [vmem:[%s327 + $0x30] sm:$0xff]
      %v340 = vld [vmem:[%s327 + $0x38] sm:$0xff]
      %v341 = vld [vmem:[%s327 + $0x40] sm:$0xff]
      %v342 = vld [vmem:[%s327 + $0x48] sm:$0xff]
      %v343 = vld [vmem:[%s327 + $0x50] sm:$0xff]
      %v344 = vld [vmem:[%s327 + $0x58] sm:$0xff]
      %v345 = vld [vmem:[%s327 + $0x60] sm:$0xff]
      %v346 = vld [vmem:[%s327 + $0x68] sm:$0xff]
      %v347 = vld [vmem:[%s327 + $0x70] sm:$0xff]
      %v348 = vld [vmem:[%s327 + $0x78] sm:$0xff]
      %v349 = vld [vmem:[%s327 + $0x80] sm:$0xff]
      %v350 = vld [vmem:[%s327 + $0x88] sm:$0xff]
      %v351 = vld [vmem:[%s327 + $0x90] sm:$0xff]
      %v352 = vld [vmem:[%s327 + $0x98] sm:$0xff]
      %v353 = vld [vmem:[%s327 + $0xa0] sm:$0xff]
      %v354 = vld [vmem:[%s327 + $0xa8] sm:$0xff]
      %v355 = vld [vmem:[%s327 + $0xb0] sm:$0xff]
      %v356 = vld [vmem:[%s327 + $0xb8] sm:$0xff]
      %v357 = vld [vmem:[%s327 + $0xc0] sm:$0xff]
      %v358 = vld [vmem:[%s327 + $0xc8] sm:$0xff]
      %v359 = vld [vmem:[%s327 + $0xd0] sm:$0xff]
      %v360 = vld [vmem:[%s327 + $0xd8] sm:$0xff]
      %v361 = vld [vmem:[%s327 + $0xe0] sm:$0xff]
      %v362 = vld [vmem:[%s327 + $0xe8] sm:$0xff]
      %v363 = vld [vmem:[%s327 + $0xf0] sm:$0xff]
      %v364 = vld [vmem:[%s327 + $0xf8] sm:$0xff]
      %v365 = vld [vmem:[%s1] sm:$0xf]
      %v366 = vld [vmem:[%s2] sm:$0x1]
      %v368 = vlaneseq
      %v369 = vshrl.u32 %v368, 7
      %v370 = vsub.s32 0, %v369
      %v371 = vrot.slane %v366, %v370
      %vm373 = vcmask 31744
      %v375 = vsel %vm373, %v333, 0
      %v378 = vsel %vm373, %v334, 0
      %v381 = vsel %vm373, %v335, 0
      %v384 = vsel %vm373, %v336, 0
      %v387 = vsel %vm373, %v337, 0
      %v390 = vsel %vm373, %v338, 0
      %v393 = vsel %vm373, %v339, 0
      %v396 = vsel %vm373, %v340, 0
      %v399 = vsel %vm373, %v341, 0
      %v402 = vsel %vm373, %v342, 0
      %v405 = vsel %vm373, %v343, 0
      %v408 = vsel %vm373, %v344, 0
      %v411 = vsel %vm373, %v345, 0
      %v414 = vsel %vm373, %v346, 0
      %v417 = vsel %vm373, %v347, 0
      %v420 = vsel %vm373, %v348, 0
      %v423 = vsel %vm373, %v349, 0
      %v426 = vsel %vm373, %v350, 0
      %v429 = vsel %vm373, %v351, 0
      %v432 = vsel %vm373, %v352, 0
      %v435 = vsel %vm373, %v353, 0
      %v438 = vsel %vm373, %v354, 0
      %v441 = vsel %vm373, %v355, 0
      %v444 = vsel %vm373, %v356, 0
      %v447 = vsel %vm373, %v357, 0
      %v450 = vsel %vm373, %v358, 0
      %v453 = vsel %vm373, %v359, 0
      %v456 = vsel %vm373, %v360, 0
      %v459 = vsel %vm373, %v361, 0
      %v462 = vsel %vm373, %v362, 0
      %v465 = vsel %vm373, %v363, 0
      %v468 = vsel %vm373, %v364, 0
      %vm470 = vcmask 1043456
      %v472 = vsel %vm470, %v365, 0
      %474 = vmatprep.subr.mxu0 0.0
      %475 = vmatpush1.msra.mxu0 0.0
      %476 = vmatprep.subr.mxu0 0.0
      %477 = vmatpush1.msra.mxu0 0.0
      %478 = vmatprep.subr.mxu0 0.0
      %479 = vmatpush1.msra.mxu0 0.0
      %480 = vmatprep.subr.mxu0 0.0
      %481 = vmatpush1.msra.mxu0 0.0
      %482 = vmatprep.subr.mxu0 0.0
      %483 = vmatpush1.msra.mxu0 0.0
      %484 = vmatprep.subr.mxu0 0.0
      %485 = vmatpush1.msra.mxu0 0.0
      %486 = vmatprep.subr.mxu0 0.0
      %487 = vmatpush1.msra.mxu0 0.0
      %488 = vmatprep.subr.mxu0 0.0
      %489 = vmatpush1.msra.mxu0 0.0
      %490 = vmatprep.subr.mxu0 0.0
      %491 = vmatpush1.msra.mxu0 0.0
      %492 = vmatprep.subr.mxu0 0.0
      %493 = vmatpush1.msra.mxu0 0.0
      %494 = vmatprep.subr.mxu0 0.0
      %495 = vmatpush1.msra.mxu0 0.0
      %496 = vmatprep.subr.mxu0 0.0
      %497 = vmatpush1.msra.mxu0 0.0
      %498 = vmatprep.subr.mxu0 0.0
      %499 = vmatpush1.msra.mxu0 0.0
      %500 = vmatprep.subr.mxu0 0.0
      %501 = vmatpush1.msra.mxu0 0.0
      %502 = vmatprep.subr.mxu0 0.0
      %503 = vmatpush1.msra.mxu0 0.0
      %504 = vmatprep.subr.mxu0 0.0
      %505 = vmatpush1.msra.mxu0 %v472
      %506 = vmatprep.subr.mxu0 0.0
      %507 = vmatpush2.msra.mxu0 0.0
      %508 = vmatprep.subr.mxu0 0.0
      %509 = vmatpush2.msra.mxu0 0.0
      %510 = vmatprep.subr.mxu0 0.0
      %511 = vmatpush2.msra.mxu0 0.0
      %512 = vmatprep.subr.mxu0 0.0
      %513 = vmatpush2.msra.mxu0 0.0
      %514 = vmatprep.subr.mxu0 0.0
      %515 = vmatpush2.msra.mxu0 0.0
      %516 = vmatprep.subr.mxu0 0.0
      %517 = vmatpush2.msra.mxu0 0.0
      %518 = vmatprep.subr.mxu0 0.0
      %519 = vmatpush2.msra.mxu0 0.0
      %520 = vmatprep.subr.mxu0 0.0
      %521 = vmatpush2.msra.mxu0 0.0
      %522 = vmatprep.subr.mxu0 0.0
      %523 = vmatpush2.msra.mxu0 0.0
      %524 = vmatprep.subr.mxu0 0.0
      %525 = vmatpush2.msra.mxu0 0.0
      %526 = vmatprep.subr.mxu0 0.0
      %527 = vmatpush2.msra.mxu0 0.0
      %528 = vmatprep.subr.mxu0 0.0
      %529 = vmatpush2.msra.mxu0 0.0
      %530 = vmatprep.subr.mxu0 0.0
      %531 = vmatpush2.msra.mxu0 0.0
      %532 = vmatprep.subr.mxu0 0.0
      %533 = vmatpush2.msra.mxu0 0.0
      %534 = vmatprep.subr.mxu0 0.0
      %535 = vmatpush2.msra.mxu0 0.0
      %536 = vmatprep.subr.mxu0 0.0
      %537 = vmatpush2.msra.mxu0 0.0
      %538 = vmatprep.mubr.f32.mxu0 0.0
      %539 = vmatmul.mubr.f32.gmra.mxu0 %v375
      %v540 = vpop.f32.mrf.mxu0
      %v541 = vadd.f32 %v371, %v540
      %v542 = vpop.f32.mrf.mxu0
      %543 = vmatprep.mubr.f32.mxu0 0.0
      %544 = vmatmul.mubr.f32.gmra.mxu0 %v378
      %v545 = vpop.f32.mrf.mxu0
      %v546 = vadd.f32 %v371, %v545
      %v547 = vpop.f32.mrf.mxu0
      %548 = vmatprep.mubr.f32.mxu0 0.0
      %549 = vmatmul.mubr.f32.gmra.mxu0 %v381
      %v550 = vpop.f32.mrf.mxu0
      %v551 = vadd.f32 %v371, %v550
      %v552 = vpop.f32.mrf.mxu0
      %553 = vmatprep.mubr.f32.mxu0 0.0
      %554 = vmatmul.mubr.f32.gmra.mxu0 %v384
      %v555 = vpop.f32.mrf.mxu0
      %v556 = vadd.f32 %v371, %v555
      %v557 = vpop.f32.mrf.mxu0
      %558 = vmatprep.mubr.f32.mxu0 0.0
      %559 = vmatmul.mubr.f32.gmra.mxu0 %v387
      %v560 = vpop.f32.mrf.mxu0
      %v561 = vadd.f32 %v371, %v560
      %v562 = vpop.f32.mrf.mxu0
      %563 = vmatprep.mubr.f32.mxu0 0.0
      %564 = vmatmul.mubr.f32.gmra.mxu0 %v390
      %v565 = vpop.f32.mrf.mxu0
      %v566 = vadd.f32 %v371, %v565
      %v567 = vpop.f32.mrf.mxu0
      %568 = vmatprep.mubr.f32.mxu0 0.0
      %569 = vmatmul.mubr.f32.gmra.mxu0 %v393
      %v570 = vpop.f32.mrf.mxu0
      %v571 = vadd.f32 %v371, %v570
      %v572 = vpop.f32.mrf.mxu0
      %573 = vmatprep.mubr.f32.mxu0 0.0
      %574 = vmatmul.mubr.f32.gmra.mxu0 %v396
      %v575 = vpop.f32.mrf.mxu0
      %v576 = vadd.f32 %v371, %v575
      %v577 = vpop.f32.mrf.mxu0
      %578 = vmatprep.mubr.f32.mxu0 0.0
      %579 = vmatmul.mubr.f32.gmra.mxu0 %v399
      %v580 = vpop.f32.mrf.mxu0
      %v581 = vadd.f32 %v371, %v580
      %v582 = vpop.f32.mrf.mxu0
      %583 = vmatprep.mubr.f32.mxu0 0.0
      %584 = vmatmul.mubr.f32.gmra.mxu0 %v402
      %v585 = vpop.f32.mrf.mxu0
      %v586 = vadd.f32 %v371, %v585
      %v587 = vpop.f32.mrf.mxu0
      %588 = vmatprep.mubr.f32.mxu0 0.0
      %589 = vmatmul.mubr.f32.gmra.mxu0 %v405
      %v590 = vpop.f32.mrf.mxu0
      %v591 = vadd.f32 %v371, %v590
      %v592 = vpop.f32.mrf.mxu0
      %593 = vmatprep.mubr.f32.mxu0 0.0
      %594 = vmatmul.mubr.f32.gmra.mxu0 %v408
      %v595 = vpop.f32.mrf.mxu0
      %v596 = vadd.f32 %v371, %v595
      %v597 = vpop.f32.mrf.mxu0
      %598 = vmatprep.mubr.f32.mxu0 0.0
      %599 = vmatmul.mubr.f32.gmra.mxu0 %v411
      %v600 = vpop.f32.mrf.mxu0
      %v601 = vadd.f32 %v371, %v600
      %v602 = vpop.f32.mrf.mxu0
      %603 = vmatprep.mubr.f32.mxu0 0.0
      %604 = vmatmul.mubr.f32.gmra.mxu0 %v414
      %v605 = vpop.f32.mrf.mxu0
      %v606 = vadd.f32 %v371, %v605
      %v607 = vpop.f32.mrf.mxu0
      %608 = vmatprep.mubr.f32.mxu0 0.0
      %609 = vmatmul.mubr.f32.gmra.mxu0 %v417
      %v610 = vpop.f32.mrf.mxu0
      %v611 = vadd.f32 %v371, %v610
      %v612 = vpop.f32.mrf.mxu0
      %613 = vmatprep.mubr.f32.mxu0 0.0
      %614 = vmatmul.mubr.f32.gmra.mxu0 %v420
      %v615 = vpop.f32.mrf.mxu0
      %v616 = vadd.f32 %v371, %v615
      %v617 = vpop.f32.mrf.mxu0
      %618 = vmatprep.mubr.f32.mxu0 0.0
      %619 = vmatmul.mubr.f32.gmra.mxu0 %v423
      %v620 = vpop.f32.mrf.mxu0
      %v621 = vadd.f32 %v371, %v620
      %v622 = vpop.f32.mrf.mxu0
      %623 = vmatprep.mubr.f32.mxu0 0.0
      %624 = vmatmul.mubr.f32.gmra.mxu0 %v426
      %v625 = vpop.f32.mrf.mxu0
      %v626 = vadd.f32 %v371, %v625
      %v627 = vpop.f32.mrf.mxu0
      %628 = vmatprep.mubr.f32.mxu0 0.0
      %629 = vmatmul.mubr.f32.gmra.mxu0 %v429
      %v630 = vpop.f32.mrf.mxu0
      %v631 = vadd.f32 %v371, %v630
      %v632 = vpop.f32.mrf.mxu0
      %633 = vmatprep.mubr.f32.mxu0 0.0
      %634 = vmatmul.mubr.f32.gmra.mxu0 %v432
      %v635 = vpop.f32.mrf.mxu0
      %v636 = vadd.f32 %v371, %v635
      %v637 = vpop.f32.mrf.mxu0
      %638 = vmatprep.mubr.f32.mxu0 0.0
      %639 = vmatmul.mubr.f32.gmra.mxu0 %v435
      %v640 = vpop.f32.mrf.mxu0
      %v641 = vadd.f32 %v371, %v640
      %v642 = vpop.f32.mrf.mxu0
      %643 = vmatprep.mubr.f32.mxu0 0.0
      %644 = vmatmul.mubr.f32.gmra.mxu0 %v438
      %v645 = vpop.f32.mrf.mxu0
      %v646 = vadd.f32 %v371, %v645
      %v647 = vpop.f32.mrf.mxu0
      %648 = vmatprep.mubr.f32.mxu0 0.0
      %649 = vmatmul.mubr.f32.gmra.mxu0 %v441
      %v650 = vpop.f32.mrf.mxu0
      %v651 = vadd.f32 %v371, %v650
      %v652 = vpop.f32.mrf.mxu0
      %653 = vmatprep.mubr.f32.mxu0 0.0
      %654 = vmatmul.mubr.f32.gmra.mxu0 %v444
      %v655 = vpop.f32.mrf.mxu0
      %v656 = vadd.f32 %v371, %v655
      %v657 = vpop.f32.mrf.mxu0
      %658 = vmatprep.mubr.f32.mxu0 0.0
      %659 = vmatmul.mubr.f32.gmra.mxu0 %v447
      %v660 = vpop.f32.mrf.mxu0
      %v661 = vadd.f32 %v371, %v660
      %v662 = vpop.f32.mrf.mxu0
      %663 = vmatprep.mubr.f32.mxu0 0.0
      %664 = vmatmul.mubr.f32.gmra.mxu0 %v450
      %v665 = vpop.f32.mrf.mxu0
      %v666 = vadd.f32 %v371, %v665
      %v667 = vpop.f32.mrf.mxu0
      %668 = vmatprep.mubr.f32.mxu0 0.0
      %669 = vmatmul.mubr.f32.gmra.mxu0 %v453
      %v670 = vpop.f32.mrf.mxu0
      %v671 = vadd.f32 %v371, %v670
      %v672 = vpop.f32.mrf.mxu0
      %673 = vmatprep.mubr.f32.mxu0 0.0
      %674 = vmatmul.mubr.f32.gmra.mxu0 %v456
      %v675 = vpop.f32.mrf.mxu0
      %v676 = vadd.f32 %v371, %v675
      %v677 = vpop.f32.mrf.mxu0
      %678 = vmatprep.mubr.f32.mxu0 0.0
      %679 = vmatmul.mubr.f32.gmra.mxu0 %v459
      %v680 = vpop.f32.mrf.mxu0
      %v681 = vadd.f32 %v371, %v680
      %v682 = vpop.f32.mrf.mxu0
      %683 = vmatprep.mubr.f32.mxu0 0.0
      %684 = vmatmul.mubr.f32.gmra.mxu0 %v462
      %v685 = vpop.f32.mrf.mxu0
      %v686 = vadd.f32 %v371, %v685
      %v687 = vpop.f32.mrf.mxu0
      %688 = vmatprep.mubr.f32.mxu0 0.0
      %689 = vmatmul.mubr.f32.gmra.mxu0 %v465
      %v690 = vpop.f32.mrf.mxu0
      %v691 = vadd.f32 %v371, %v690
      %v692 = vpop.f32.mrf.mxu0
      %693 = vmatprep.mubr.f32.mxu0 0.0
      %694 = vmatmul.mubr.f32.gmra.mxu0 %v468
      %v695 = vpop.f32.mrf.mxu0
      %v696 = vadd.f32 %v371, %v695
      %v697 = vpop.f32.mrf.mxu0
      %698 = vdwg.mxu0
      %v699 = vmax.f32 %v541, 0.0
      %v700 = vmax.f32 %v546, 0.0
      %v701 = vmax.f32 %v551, 0.0
      %v702 = vmax.f32 %v556, 0.0
      %v703 = vmax.f32 %v561, 0.0
      %v704 = vmax.f32 %v566, 0.0
      %v705 = vmax.f32 %v571, 0.0
      %v706 = vmax.f32 %v576, 0.0
      %v707 = vmax.f32 %v581, 0.0
      %v708 = vmax.f32 %v586, 0.0
      %v709 = vmax.f32 %v591, 0.0
      %v710 = vmax.f32 %v596, 0.0
      %v711 = vmax.f32 %v601, 0.0
      %v712 = vmax.f32 %v606, 0.0
      %v713 = vmax.f32 %v611, 0.0
      %v714 = vmax.f32 %v616, 0.0
      %v715 = vmax.f32 %v621, 0.0
      %v716 = vmax.f32 %v626, 0.0
      %v717 = vmax.f32 %v631, 0.0
      %v718 = vmax.f32 %v636, 0.0
      %v719 = vmax.f32 %v641, 0.0
      %v720 = vmax.f32 %v646, 0.0
      %v721 = vmax.f32 %v651, 0.0
      %v722 = vmax.f32 %v656, 0.0
      %v723 = vmax.f32 %v661, 0.0
      %v724 = vmax.f32 %v666, 0.0
      %v725 = vmax.f32 %v671, 0.0
      %v726 = vmax.f32 %v676, 0.0
      %v727 = vmax.f32 %v681, 0.0
      %v728 = vmax.f32 %v686, 0.0
      %v729 = vmax.f32 %v691, 0.0
      %v730 = vmax.f32 %v696, 0.0
      %731 = vst.msk [vmem:[#allocation2] sm:$0xff] %vm373, 0.0
      %vm732 = vcmask 24576
      %733 = vst.msk [vmem:[#allocation2 + $0x8] sm:$0x1] %vm732, 0.0
      %734 = vst.msk [vmem:[#allocation2] sm:$0x1] %vm732, 0.0
      %735 = vst.msk [vmem:[#allocation2 + $0x10] sm:$0x1] %vm732, 0.0
      %736 = vst.msk [vmem:[#allocation2 + $0x20] sm:$0x1] %vm732, 0.0
      %737 = vst.msk [vmem:[#allocation2 + $0x30] sm:$0x1] %vm732, 0.0
      %738 = vst.msk [vmem:[#allocation2 + $0x40] sm:$0x1] %vm732, 0.0
      %739 = vst.msk [vmem:[#allocation2 + $0x50] sm:$0x1] %vm732, 0.0
      %740 = vst.msk [vmem:[#allocation2 + $0x60] sm:$0x1] %vm732, 0.0
      %741 = vst.msk [vmem:[#allocation2 + $0x70] sm:$0x1] %vm732, 0.0
      %742 = vst.msk [vmem:[#allocation2 + $0x80] sm:$0x1] %vm732, 0.0
      %s743 = scalar_lea.vmem [#allocation2], 16
      %744 = vst.msk [vmem:[%s743 + $0x1] sm:$0xff] %vm373, %v699
      %745 = vst.msk [vmem:[%s743 + $0x11] sm:$0xff] %vm373, %v701
      %746 = vst.msk [vmem:[%s743 + $0x21] sm:$0xff] %vm373, %v703
      %747 = vst.msk [vmem:[%s743 + $0x31] sm:$0xff] %vm373, %v705
      %748 = vst.msk [vmem:[%s743 + $0x41] sm:$0xff] %vm373, %v707
      %749 = vst.msk [vmem:[%s743 + $0x51] sm:$0xff] %vm373, %v709
      %750 = vst.msk [vmem:[%s743 + $0x61] sm:$0xff] %vm373, %v711
      %751 = vst.msk [vmem:[%s743 + $0x71] sm:$0xff] %vm373, %v713
      %s752 = scalar_lea.vmem [#allocation2], 144
      %753 = vst.msk [vmem:[%s752] sm:$0xff] %vm373, 0.0
      %754 = vst.msk [vmem:[%s752 + $0x8] sm:$0x1] %vm732, 0.0
      %755 = vst.msk [vmem:[%s752 + $0x8] sm:$0x1] %vm732, 0.0
      %756 = vst.msk [vmem:[%s752 + $0x18] sm:$0x1] %vm732, 0.0
      %757 = vst.msk [vmem:[%s752 + $0x28] sm:$0x1] %vm732, 0.0
      %758 = vst.msk [vmem:[%s752 + $0x38] sm:$0x1] %vm732, 0.0
      %759 = vst.msk [vmem:[%s752 + $0x48] sm:$0x1] %vm732, 0.0
      %760 = vst.msk [vmem:[%s752 + $0x58] sm:$0x1] %vm732, 0.0
      %761 = vst.msk [vmem:[%s752 + $0x68] sm:$0x1] %vm732, 0.0
      %762 = vst.msk [vmem:[%s752 + $0x78] sm:$0x1] %vm732, 0.0
      %763 = vst.msk [vmem:[%s752 + $0x88] sm:$0x1] %vm732, 0.0
      %s764 = scalar_lea.vmem [#allocation2], 160
      %765 = vst.msk [vmem:[%s764] sm:$0xff] %vm373, %v700
      %766 = vst.msk [vmem:[%s764 + $0x10] sm:$0xff] %vm373, %v702
      %767 = vst.msk [vmem:[%s764 + $0x20] sm:$0xff] %vm373, %v704
      %768 = vst.msk [vmem:[%s764 + $0x30] sm:$0xff] %vm373, %v706
      %769 = vst.msk [vmem:[%s764 + $0x40] sm:$0xff] %vm373, %v708
      %770 = vst.msk [vmem:[%s764 + $0x50] sm:$0xff] %vm373, %v710
      %771 = vst.msk [vmem:[%s764 + $0x60] sm:$0xff] %vm373, %v712
      %772 = vst.msk [vmem:[%s764 + $0x70] sm:$0xff] %vm373, %v714
      %s773 = scalar_lea.vmem [#allocation2], 416
      %774 = vst.msk [vmem:[%s773] sm:$0xff] %vm373, 0.0
      %775 = vst.msk [vmem:[%s773 + $0x8] sm:$0x1] %vm732, 0.0
      %s776 = scalar_lea.vmem [#allocation2], 288
      %777 = vst.msk [vmem:[%s776] sm:$0x1] %vm732, 0.0
      %778 = vst.msk [vmem:[%s776 + $0x10] sm:$0x1] %vm732, 0.0
      %779 = vst.msk [vmem:[%s776 + $0x20] sm:$0x1] %vm732, 0.0
      %780 = vst.msk [vmem:[%s776 + $0x30] sm:$0x1] %vm732, 0.0
      %781 = vst.msk [vmem:[%s776 + $0x40] sm:$0x1] %vm732, 0.0
      %782 = vst.msk [vmem:[%s776 + $0x50] sm:$0x1] %vm732, 0.0
      %783 = vst.msk [vmem:[%s776 + $0x60] sm:$0x1] %vm732, 0.0
      %784 = vst.msk [vmem:[%s776 + $0x70] sm:$0x1] %vm732, 0.0
      %785 = vst.msk [vmem:[%s776 + $0x80] sm:$0x1] %vm732, 0.0
      %786 = vst.msk [vmem:[%s776 + $0x1] sm:$0xff] %vm373, %v715
      %787 = vst.msk [vmem:[%s776 + $0x11] sm:$0xff] %vm373, %v717
      %788 = vst.msk [vmem:[%s776 + $0x21] sm:$0xff] %vm373, %v719
      %789 = vst.msk [vmem:[%s776 + $0x31] sm:$0xff] %vm373, %v721
      %790 = vst.msk [vmem:[%s776 + $0x41] sm:$0xff] %vm373, %v723
      %791 = vst.msk [vmem:[%s776 + $0x51] sm:$0xff] %vm373, %v725
      %792 = vst.msk [vmem:[%s776 + $0x61] sm:$0xff] %vm373, %v727
      %793 = vst.msk [vmem:[%s776 + $0x71] sm:$0xff] %vm373, %v729
      %s794 = scalar_lea.vmem [#allocation2], 560
      %795 = vst.msk [vmem:[%s794] sm:$0xff] %vm373, 0.0
      %796 = vst.msk [vmem:[%s794 + $0x8] sm:$0x1] %vm732, 0.0
      %s797 = scalar_lea.vmem [#allocation2], 432
      %798 = vst.msk [vmem:[%s797 + $0x8] sm:$0x1] %vm732, 0.0
      %799 = vst.msk [vmem:[%s797 + $0x18] sm:$0x1] %vm732, 0.0
      %800 = vst.msk [vmem:[%s797 + $0x28] sm:$0x1] %vm732, 0.0
      %801 = vst.msk [vmem:[%s797 + $0x38] sm:$0x1] %vm732, 0.0
      %802 = vst.msk [vmem:[%s797 + $0x48] sm:$0x1] %vm732, 0.0
      %803 = vst.msk [vmem:[%s797 + $0x58] sm:$0x1] %vm732, 0.0
      %804 = vst.msk [vmem:[%s797 + $0x68] sm:$0x1] %vm732, 0.0
      %805 = vst.msk [vmem:[%s797 + $0x78] sm:$0x1] %vm732, 0.0
      %806 = vst.msk [vmem:[%s797 + $0x88] sm:$0x1] %vm732, 0.0
      %807 = vst.msk [vmem:[%s797] sm:$0xff] %vm373, %v716
      %808 = vst.msk [vmem:[%s797 + $0x10] sm:$0xff] %vm373, %v718
      %809 = vst.msk [vmem:[%s797 + $0x20] sm:$0xff] %vm373, %v720
      %810 = vst.msk [vmem:[%s797 + $0x30] sm:$0xff] %vm373, %v722
      %811 = vst.msk [vmem:[%s797 + $0x40] sm:$0xff] %vm373, %v724
      %812 = vst.msk [vmem:[%s797 + $0x50] sm:$0xff] %vm373, %v726
      %813 = vst.msk [vmem:[%s797 + $0x60] sm:$0xff] %vm373, %v728
      %814 = vst.msk [vmem:[%s797 + $0x70] sm:$0xff] %vm373, %v730
      %v815 = vld [vmem:[#allocation2] sm:$0xff]
      %v816 = vld [vmem:[#allocation2 + $0x10] sm:$0xff]
      %v817 = vld [vmem:[#allocation2 + $0x20] sm:$0xff]
      %v818 = vld [vmem:[#allocation2 + $0x30] sm:$0xff]
      %v819 = vld [vmem:[#allocation2 + $0x40] sm:$0xff]
      %v820 = vld [vmem:[#allocation2 + $0x50] sm:$0xff]
      %v821 = vld [vmem:[#allocation2 + $0x60] sm:$0xff]
      %v822 = vld [vmem:[#allocation2 + $0x70] sm:$0xff]
      %v823 = vld [vmem:[%s3] sm:$0xf]
      %v824 = vld [vmem:[%s752] sm:$0xff]
      %v825 = vld [vmem:[%s752 + $0x10] sm:$0xff]
      %v826 = vld [vmem:[%s752 + $0x20] sm:$0xff]
      %v827 = vld [vmem:[%s752 + $0x30] sm:$0xff]
      %v828 = vld [vmem:[%s752 + $0x40] sm:$0xff]
      %v829 = vld [vmem:[%s752 + $0x50] sm:$0xff]
      %v830 = vld [vmem:[%s752 + $0x60] sm:$0xff]
      %v831 = vld [vmem:[%s752 + $0x70] sm:$0xff]
      %s832 = scalar_lea.vmem %s3, 4
      %v833 = vld [vmem:[%s832] sm:$0xf]
      %v835 = vsel %vm373, %v824, 0
      %v838 = vsel %vm373, %v825, 0
      %v841 = vsel %vm373, %v826, 0
      %v844 = vsel %vm373, %v827, 0
      %v847 = vsel %vm373, %v828, 0
      %v850 = vsel %vm373, %v829, 0
      %v853 = vsel %vm373, %v830, 0
      %v856 = vsel %vm373, %v831, 0
      %v859 = vsel %vm470, %v833, 0
      %861 = vmatprep.subr.mxu0 0.0
      %862 = vmatpush1.msra.mxu0 0.0
      %863 = vmatprep.subr.mxu0 0.0
      %864 = vmatpush1.msra.mxu0 0.0
      %865 = vmatprep.subr.mxu0 0.0
      %866 = vmatpush1.msra.mxu0 0.0
      %867 = vmatprep.subr.mxu0 0.0
      %868 = vmatpush1.msra.mxu0 0.0
      %869 = vmatprep.subr.mxu0 0.0
      %870 = vmatpush1.msra.mxu0 0.0
      %871 = vmatprep.subr.mxu0 0.0
      %872 = vmatpush1.msra.mxu0 0.0
      %873 = vmatprep.subr.mxu0 0.0
      %874 = vmatpush1.msra.mxu0 0.0
      %875 = vmatprep.subr.mxu0 0.0
      %876 = vmatpush1.msra.mxu0 0.0
      %877 = vmatprep.subr.mxu0 0.0
      %878 = vmatpush1.msra.mxu0 0.0
      %879 = vmatprep.subr.mxu0 0.0
      %880 = vmatpush1.msra.mxu0 0.0
      %881 = vmatprep.subr.mxu0 0.0
      %882 = vmatpush1.msra.mxu0 0.0
      %883 = vmatprep.subr.mxu0 0.0
      %884 = vmatpush1.msra.mxu0 0.0
      %885 = vmatprep.subr.mxu0 0.0
      %886 = vmatpush1.msra.mxu0 0.0
      %887 = vmatprep.subr.mxu0 0.0
      %888 = vmatpush1.msra.mxu0 0.0
      %889 = vmatprep.subr.mxu0 0.0
      %890 = vmatpush1.msra.mxu0 0.0
      %891 = vmatprep.subr.mxu0 0.0
      %892 = vmatpush1.msra.mxu0 %v859
      %893 = vmatprep.subr.mxu0 0.0
      %894 = vmatpush2.msra.mxu0 0.0
      %895 = vmatprep.subr.mxu0 0.0
      %896 = vmatpush2.msra.mxu0 0.0
      %897 = vmatprep.subr.mxu0 0.0
      %898 = vmatpush2.msra.mxu0 0.0
      %899 = vmatprep.subr.mxu0 0.0
      %900 = vmatpush2.msra.mxu0 0.0
      %901 = vmatprep.subr.mxu0 0.0
      %902 = vmatpush2.msra.mxu0 0.0
      %903 = vmatprep.subr.mxu0 0.0
      %904 = vmatpush2.msra.mxu0 0.0
      %905 = vmatprep.subr.mxu0 0.0
      %906 = vmatpush2.msra.mxu0 0.0
      %907 = vmatprep.subr.mxu0 0.0
      %908 = vmatpush2.msra.mxu0 0.0
      %909 = vmatprep.subr.mxu0 0.0
      %910 = vmatpush2.msra.mxu0 0.0
      %911 = vmatprep.subr.mxu0 0.0
      %912 = vmatpush2.msra.mxu0 0.0
      %913 = vmatprep.subr.mxu0 0.0
      %914 = vmatpush2.msra.mxu0 0.0
      %915 = vmatprep.subr.mxu0 0.0
      %916 = vmatpush2.msra.mxu0 0.0
      %917 = vmatprep.subr.mxu0 0.0
      %918 = vmatpush2.msra.mxu0 0.0
      %919 = vmatprep.subr.mxu0 0.0
      %920 = vmatpush2.msra.mxu0 0.0
      %921 = vmatprep.subr.mxu0 0.0
      %922 = vmatpush2.msra.mxu0 0.0
      %923 = vmatprep.subr.mxu0 0.0
      %924 = vmatpush2.msra.mxu0 0.0
      %925 = vmatprep.mubr.f32.mxu0 0.0
      %926 = vmatmul.mubr.f32.gmra.mxu0 %v835
      %v927 = vpop.f32.mrf.mxu0
      %v928 = vadd.f32 0.0, %v927
      %v929 = vpop.f32.mrf.mxu0
      %930 = vmatprep.mubr.f32.mxu0 0.0
      %931 = vmatmul.mubr.f32.gmra.mxu0 %v838
      %v932 = vpop.f32.mrf.mxu0
      %v933 = vadd.f32 0.0, %v932
      %v934 = vpop.f32.mrf.mxu0
      %935 = vmatprep.mubr.f32.mxu0 0.0
      %936 = vmatmul.mubr.f32.gmra.mxu0 %v841
      %v937 = vpop.f32.mrf.mxu0
      %v938 = vadd.f32 0.0, %v937
      %v939 = vpop.f32.mrf.mxu0
      %940 = vmatprep.mubr.f32.mxu0 0.0
      %941 = vmatmul.mubr.f32.gmra.mxu0 %v844
      %v942 = vpop.f32.mrf.mxu0
      %v943 = vadd.f32 0.0, %v942
      %v944 = vpop.f32.mrf.mxu0
      %945 = vmatprep.mubr.f32.mxu0 0.0
      %946 = vmatmul.mubr.f32.gmra.mxu0 %v847
      %v947 = vpop.f32.mrf.mxu0
      %v948 = vadd.f32 0.0, %v947
      %v949 = vpop.f32.mrf.mxu0
      %950 = vmatprep.mubr.f32.mxu0 0.0
      %951 = vmatmul.mubr.f32.gmra.mxu0 %v850
      %v952 = vpop.f32.mrf.mxu0
      %v953 = vadd.f32 0.0, %v952
      %v954 = vpop.f32.mrf.mxu0
      %955 = vmatprep.mubr.f32.mxu0 0.0
      %956 = vmatmul.mubr.f32.gmra.mxu0 %v853
      %v957 = vpop.f32.mrf.mxu0
      %v958 = vadd.f32 0.0, %v957
      %v959 = vpop.f32.mrf.mxu0
      %960 = vmatprep.mubr.f32.mxu0 0.0
      %961 = vmatmul.mubr.f32.gmra.mxu0 %v856
      %v962 = vpop.f32.mrf.mxu0
      %v963 = vadd.f32 0.0, %v962
      %v964 = vpop.f32.mrf.mxu0
      %965 = vdwg.mxu0
      %v967 = vsel %vm373, %v815, 0
      %v970 = vsel %vm373, %v816, 0
      %v973 = vsel %vm373, %v817, 0
      %v976 = vsel %vm373, %v818, 0
      %v979 = vsel %vm373, %v819, 0
      %v982 = vsel %vm373, %v820, 0
      %v985 = vsel %vm373, %v821, 0
      %v988 = vsel %vm373, %v822, 0
      %v991 = vsel %vm470, %v823, 0
      %993 = vmatprep.subr.mxu0 0.0
      %994 = vmatpush1.msra.mxu0 0.0
      %995 = vmatprep.subr.mxu0 0.0
      %996 = vmatpush1.msra.mxu0 0.0
      %997 = vmatprep.subr.mxu0 0.0
      %998 = vmatpush1.msra.mxu0 0.0
      %999 = vmatprep.subr.mxu0 0.0
      %1000 = vmatpush1.msra.mxu0 0.0
      %1001 = vmatprep.subr.mxu0 0.0
      %1002 = vmatpush1.msra.mxu0 0.0
      %1003 = vmatprep.subr.mxu0 0.0
      %1004 = vmatpush1.msra.mxu0 0.0
      %1005 = vmatprep.subr.mxu0 0.0
      %1006 = vmatpush1.msra.mxu0 0.0
      %1007 = vmatprep.subr.mxu0 0.0
      %1008 = vmatpush1.msra.mxu0 0.0
      %1009 = vmatprep.subr.mxu0 0.0
      %1010 = vmatpush1.msra.mxu0 0.0
      %1011 = vmatprep.subr.mxu0 0.0
      %1012 = vmatpush1.msra.mxu0 0.0
      %1013 = vmatprep.subr.mxu0 0.0
      %1014 = vmatpush1.msra.mxu0 0.0
      %1015 = vmatprep.subr.mxu0 0.0
      %1016 = vmatpush1.msra.mxu0 0.0
      %1017 = vmatprep.subr.mxu0 0.0
      %1018 = vmatpush1.msra.mxu0 0.0
      %1019 = vmatprep.subr.mxu0 0.0
      %1020 = vmatpush1.msra.mxu0 0.0
      %1021 = vmatprep.subr.mxu0 0.0
      %1022 = vmatpush1.msra.mxu0 0.0
      %1023 = vmatprep.subr.mxu0 0.0
      %1024 = vmatpush1.msra.mxu0 %v991
      %1025 = vmatprep.subr.mxu0 0.0
      %1026 = vmatpush2.msra.mxu0 0.0
      %1027 = vmatprep.subr.mxu0 0.0
      %1028 = vmatpush2.msra.mxu0 0.0
      %1029 = vmatprep.subr.mxu0 0.0
      %1030 = vmatpush2.msra.mxu0 0.0
      %1031 = vmatprep.subr.mxu0 0.0
      %1032 = vmatpush2.msra.mxu0 0.0
      %1033 = vmatprep.subr.mxu0 0.0
      %1034 = vmatpush2.msra.mxu0 0.0
      %1035 = vmatprep.subr.mxu0 0.0
      %1036 = vmatpush2.msra.mxu0 0.0
      %1037 = vmatprep.subr.mxu0 0.0
      %1038 = vmatpush2.msra.mxu0 0.0
      %1039 = vmatprep.subr.mxu0 0.0
      %1040 = vmatpush2.msra.mxu0 0.0
      %1041 = vmatprep.subr.mxu0 0.0
      %1042 = vmatpush2.msra.mxu0 0.0
      %1043 = vmatprep.subr.mxu0 0.0
      %1044 = vmatpush2.msra.mxu0 0.0
      %1045 = vmatprep.subr.mxu0 0.0
      %1046 = vmatpush2.msra.mxu0 0.0
      %1047 = vmatprep.subr.mxu0 0.0
      %1048 = vmatpush2.msra.mxu0 0.0
      %1049 = vmatprep.subr.mxu0 0.0
      %1050 = vmatpush2.msra.mxu0 0.0
      %1051 = vmatprep.subr.mxu0 0.0
      %1052 = vmatpush2.msra.mxu0 0.0
      %1053 = vmatprep.subr.mxu0 0.0
      %1054 = vmatpush2.msra.mxu0 0.0
      %1055 = vmatprep.subr.mxu0 0.0
      %1056 = vmatpush2.msra.mxu0 0.0
      %1057 = vmatprep.mubr.f32.mxu0 0.0
      %1058 = vmatmul.mubr.f32.gmra.mxu0 %v967
      %v1059 = vpop.f32.mrf.mxu0
      %v1060 = vadd.f32 %v928, %v1059
      %v1061 = vpop.f32.mrf.mxu0
      %1062 = vmatprep.mubr.f32.mxu0 0.0
      %1063 = vmatmul.mubr.f32.gmra.mxu0 %v970
      %v1064 = vpop.f32.mrf.mxu0
      %v1065 = vadd.f32 %v933, %v1064
      %v1066 = vpop.f32.mrf.mxu0
      %1067 = vmatprep.mubr.f32.mxu0 0.0
      %1068 = vmatmul.mubr.f32.gmra.mxu0 %v973
      %v1069 = vpop.f32.mrf.mxu0
      %v1070 = vadd.f32 %v938, %v1069
      %v1071 = vpop.f32.mrf.mxu0
      %1072 = vmatprep.mubr.f32.mxu0 0.0
      %1073 = vmatmul.mubr.f32.gmra.mxu0 %v976
      %v1074 = vpop.f32.mrf.mxu0
      %v1075 = vadd.f32 %v943, %v1074
      %v1076 = vpop.f32.mrf.mxu0
      %1077 = vmatprep.mubr.f32.mxu0 0.0
      %1078 = vmatmul.mubr.f32.gmra.mxu0 %v979
      %v1079 = vpop.f32.mrf.mxu0
      %v1080 = vadd.f32 %v948, %v1079
      %v1081 = vpop.f32.mrf.mxu0
      %1082 = vmatprep.mubr.f32.mxu0 0.0
      %1083 = vmatmul.mubr.f32.gmra.mxu0 %v982
      %v1084 = vpop.f32.mrf.mxu0
      %v1085 = vadd.f32 %v953, %v1084
      %v1086 = vpop.f32.mrf.mxu0
      %1087 = vmatprep.mubr.f32.mxu0 0.0
      %1088 = vmatmul.mubr.f32.gmra.mxu0 %v985
      %v1089 = vpop.f32.mrf.mxu0
      %v1090 = vadd.f32 %v958, %v1089
      %v1091 = vpop.f32.mrf.mxu0
      %1092 = vmatprep.mubr.f32.mxu0 0.0
      %1093 = vmatmul.mubr.f32.gmra.mxu0 %v988
      %v1094 = vpop.f32.mrf.mxu0
      %v1095 = vadd.f32 %v963, %v1094
      %v1096 = vpop.f32.mrf.mxu0
      %1097 = vdwg.mxu0
      %v1098 = vld [vmem:[#allocation2 + $0x1] sm:$0xff]
      %v1099 = vld [vmem:[#allocation2 + $0x11] sm:$0xff]
      %v1100 = vld [vmem:[#allocation2 + $0x21] sm:$0xff]
      %v1101 = vld [vmem:[#allocation2 + $0x31] sm:$0xff]
      %v1102 = vld [vmem:[#allocation2 + $0x41] sm:$0xff]
      %v1103 = vld [vmem:[#allocation2 + $0x51] sm:$0xff]
      %v1104 = vld [vmem:[#allocation2 + $0x61] sm:$0xff]
      %v1105 = vld [vmem:[#allocation2 + $0x71] sm:$0xff]
      %s1106 = scalar_lea.vmem %s3, 8
      %v1107 = vld [vmem:[%s1106] sm:$0xf]
      %v1109 = vsel %vm373, %v1098, 0
      %v1112 = vsel %vm373, %v1099, 0
      %v1115 = vsel %vm373, %v1100, 0
      %v1118 = vsel %vm373, %v1101, 0
      %v1121 = vsel %vm373, %v1102, 0
      %v1124 = vsel %vm373, %v1103, 0
      %v1127 = vsel %vm373, %v1104, 0
      %v1130 = vsel %vm373, %v1105, 0
      %v1133 = vsel %vm470, %v1107, 0
      %1135 = vmatprep.subr.mxu0 0.0
      %1136 = vmatpush1.msra.mxu0 0.0
      %1137 = vmatprep.subr.mxu0 0.0
      %1138 = vmatpush1.msra.mxu0 0.0
      %1139 = vmatprep.subr.mxu0 0.0
      %1140 = vmatpush1.msra.mxu0 0.0
      %1141 = vmatprep.subr.mxu0 0.0
      %1142 = vmatpush1.msra.mxu0 0.0
      %1143 = vmatprep.subr.mxu0 0.0
      %1144 = vmatpush1.msra.mxu0 0.0
      %1145 = vmatprep.subr.mxu0 0.0
      %1146 = vmatpush1.msra.mxu0 0.0
      %1147 = vmatprep.subr.mxu0 0.0
      %1148 = vmatpush1.msra.mxu0 0.0
      %1149 = vmatprep.subr.mxu0 0.0
      %1150 = vmatpush1.msra.mxu0 0.0
      %1151 = vmatprep.subr.mxu0 0.0
      %1152 = vmatpush1.msra.mxu0 0.0
      %1153 = vmatprep.subr.mxu0 0.0
      %1154 = vmatpush1.msra.mxu0 0.0
      %1155 = vmatprep.subr.mxu0 0.0
      %1156 = vmatpush1.msra.mxu0 0.0
      %1157 = vmatprep.subr.mxu0 0.0
      %1158 = vmatpush1.msra.mxu0 0.0
      %1159 = vmatprep.subr.mxu0 0.0
      %1160 = vmatpush1.msra.mxu0 0.0
      %1161 = vmatprep.subr.mxu0 0.0
      %1162 = vmatpush1.msra.mxu0 0.0
      %1163 = vmatprep.subr.mxu0 0.0
      %1164 = vmatpush1.msra.mxu0 0.0
      %1165 = vmatprep.subr.mxu0 0.0
      %1166 = vmatpush1.msra.mxu0 %v1133
      %1167 = vmatprep.subr.mxu0 0.0
      %1168 = vmatpush2.msra.mxu0 0.0
      %1169 = vmatprep.subr.mxu0 0.0
      %1170 = vmatpush2.msra.mxu0 0.0
      %1171 = vmatprep.subr.mxu0 0.0
      %1172 = vmatpush2.msra.mxu0 0.0
      %1173 = vmatprep.subr.mxu0 0.0
      %1174 = vmatpush2.msra.mxu0 0.0
      %1175 = vmatprep.subr.mxu0 0.0
      %1176 = vmatpush2.msra.mxu0 0.0
      %1177 = vmatprep.subr.mxu0 0.0
      %1178 = vmatpush2.msra.mxu0 0.0
      %1179 = vmatprep.subr.mxu0 0.0
      %1180 = vmatpush2.msra.mxu0 0.0
      %1181 = vmatprep.subr.mxu0 0.0
      %1182 = vmatpush2.msra.mxu0 0.0
      %1183 = vmatprep.subr.mxu0 0.0
      %1184 = vmatpush2.msra.mxu0 0.0
      %1185 = vmatprep.subr.mxu0 0.0
      %1186 = vmatpush2.msra.mxu0 0.0
      %1187 = vmatprep.subr.mxu0 0.0
      %1188 = vmatpush2.msra.mxu0 0.0
      %1189 = vmatprep.subr.mxu0 0.0
      %1190 = vmatpush2.msra.mxu0 0.0
      %1191 = vmatprep.subr.mxu0 0.0
      %1192 = vmatpush2.msra.mxu0 0.0
      %1193 = vmatprep.subr.mxu0 0.0
      %1194 = vmatpush2.msra.mxu0 0.0
      %1195 = vmatprep.subr.mxu0 0.0
      %1196 = vmatpush2.msra.mxu0 0.0
      %1197 = vmatprep.subr.mxu0 0.0
      %1198 = vmatpush2.msra.mxu0 0.0
      %1199 = vmatprep.mubr.f32.mxu0 0.0
      %1200 = vmatmul.mubr.f32.gmra.mxu0 %v1109
      %v1201 = vpop.f32.mrf.mxu0
      %v1202 = vadd.f32 0.0, %v1201
      %v1203 = vpop.f32.mrf.mxu0
      %1204 = vmatprep.mubr.f32.mxu0 0.0
      %1205 = vmatmul.mubr.f32.gmra.mxu0 %v1112
      %v1206 = vpop.f32.mrf.mxu0
      %v1207 = vadd.f32 0.0, %v1206
      %v1208 = vpop.f32.mrf.mxu0
      %1209 = vmatprep.mubr.f32.mxu0 0.0
      %1210 = vmatmul.mubr.f32.gmra.mxu0 %v1115
      %v1211 = vpop.f32.mrf.mxu0
      %v1212 = vadd.f32 0.0, %v1211
      %v1213 = vpop.f32.mrf.mxu0
      %1214 = vmatprep.mubr.f32.mxu0 0.0
      %1215 = vmatmul.mubr.f32.gmra.mxu0 %v1118
      %v1216 = vpop.f32.mrf.mxu0
      %v1217 = vadd.f32 0.0, %v1216
      %v1218 = vpop.f32.mrf.mxu0
      %1219 = vmatprep.mubr.f32.mxu0 0.0
      %1220 = vmatmul.mubr.f32.gmra.mxu0 %v1121
      %v1221 = vpop.f32.mrf.mxu0
      %v1222 = vadd.f32 0.0, %v1221
      %v1223 = vpop.f32.mrf.mxu0
      %1224 = vmatprep.mubr.f32.mxu0 0.0
      %1225 = vmatmul.mubr.f32.gmra.mxu0 %v1124
      %v1226 = vpop.f32.mrf.mxu0
      %v1227 = vadd.f32 0.0, %v1226
      %v1228 = vpop.f32.mrf.mxu0
      %1229 = vmatprep.mubr.f32.mxu0 0.0
      %1230 = vmatmul.mubr.f32.gmra.mxu0 %v1127
      %v1231 = vpop.f32.mrf.mxu0
      %v1232 = vadd.f32 0.0, %v1231
      %v1233 = vpop.f32.mrf.mxu0
      %1234 = vmatprep.mubr.f32.mxu0 0.0
      %1235 = vmatmul.mubr.f32.gmra.mxu0 %v1130
      %v1236 = vpop.f32.mrf.mxu0
      %v1237 = vadd.f32 0.0, %v1236
      %v1238 = vpop.f32.mrf.mxu0
      %1239 = vdwg.mxu0
      %v1240 = vadd.f32 %v1060, %v1202
      %v1241 = vadd.f32 %v1065, %v1207
      %v1242 = vadd.f32 %v1070, %v1212
      %v1243 = vadd.f32 %v1075, %v1217
      %v1244 = vadd.f32 %v1080, %v1222
      %v1245 = vadd.f32 %v1085, %v1227
      %v1246 = vadd.f32 %v1090, %v1232
      %v1247 = vadd.f32 %v1095, %v1237
      %v1248 = vld [vmem:[%s776] sm:$0xff]
      %v1249 = vld [vmem:[%s776 + $0x10] sm:$0xff]
      %v1250 = vld [vmem:[%s776 + $0x20] sm:$0xff]
      %v1251 = vld [vmem:[%s776 + $0x30] sm:$0xff]
      %v1252 = vld [vmem:[%s776 + $0x40] sm:$0xff]
      %v1253 = vld [vmem:[%s776 + $0x50] sm:$0xff]
      %v1254 = vld [vmem:[%s776 + $0x60] sm:$0xff]
      %v1255 = vld [vmem:[%s776 + $0x70] sm:$0xff]
      %s1256 = scalar_lea.vmem %s3, 12
      %v1257 = vld [vmem:[%s1256] sm:$0xf]
      %v1259 = vsel %vm373, %v1248, 0
      %v1262 = vsel %vm373, %v1249, 0
      %v1265 = vsel %vm373, %v1250, 0
      %v1268 = vsel %vm373, %v1251, 0
      %v1271 = vsel %vm373, %v1252, 0
      %v1274 = vsel %vm373, %v1253, 0
      %v1277 = vsel %vm373, %v1254, 0
      %v1280 = vsel %vm373, %v1255, 0
      %v1283 = vsel %vm470, %v1257, 0
      %1285 = vmatprep.subr.mxu0 0.0
      %1286 = vmatpush1.msra.mxu0 0.0
      %1287 = vmatprep.subr.mxu0 0.0
      %1288 = vmatpush1.msra.mxu0 0.0
      %1289 = vmatprep.subr.mxu0 0.0
      %1290 = vmatpush1.msra.mxu0 0.0
      %1291 = vmatprep.subr.mxu0 0.0
      %1292 = vmatpush1.msra.mxu0 0.0
      %1293 = vmatprep.subr.mxu0 0.0
      %1294 = vmatpush1.msra.mxu0 0.0
      %1295 = vmatprep.subr.mxu0 0.0
      %1296 = vmatpush1.msra.mxu0 0.0
      %1297 = vmatprep.subr.mxu0 0.0
      %1298 = vmatpush1.msra.mxu0 0.0
      %1299 = vmatprep.subr.mxu0 0.0
      %1300 = vmatpush1.msra.mxu0 0.0
      %1301 = vmatprep.subr.mxu0 0.0
      %1302 = vmatpush1.msra.mxu0 0.0
      %1303 = vmatprep.subr.mxu0 0.0
      %1304 = vmatpush1.msra.mxu0 0.0
      %1305 = vmatprep.subr.mxu0 0.0
      %1306 = vmatpush1.msra.mxu0 0.0
      %1307 = vmatprep.subr.mxu0 0.0
      %1308 = vmatpush1.msra.mxu0 0.0
      %1309 = vmatprep.subr.mxu0 0.0
      %1310 = vmatpush1.msra.mxu0 0.0
      %1311 = vmatprep.subr.mxu0 0.0
      %1312 = vmatpush1.msra.mxu0 0.0
      %1313 = vmatprep.subr.mxu0 0.0
      %1314 = vmatpush1.msra.mxu0 0.0
      %1315 = vmatprep.subr.mxu0 0.0
      %1316 = vmatpush1.msra.mxu0 %v1283
      %1317 = vmatprep.subr.mxu0 0.0
      %1318 = vmatpush2.msra.mxu0 0.0
      %1319 = vmatprep.subr.mxu0 0.0
      %1320 = vmatpush2.msra.mxu0 0.0
      %1321 = vmatprep.subr.mxu0 0.0
      %1322 = vmatpush2.msra.mxu0 0.0
      %1323 = vmatprep.subr.mxu0 0.0
      %1324 = vmatpush2.msra.mxu0 0.0
      %1325 = vmatprep.subr.mxu0 0.0
      %1326 = vmatpush2.msra.mxu0 0.0
      %1327 = vmatprep.subr.mxu0 0.0
      %1328 = vmatpush2.msra.mxu0 0.0
      %1329 = vmatprep.subr.mxu0 0.0
      %1330 = vmatpush2.msra.mxu0 0.0
      %1331 = vmatprep.subr.mxu0 0.0
      %1332 = vmatpush2.msra.mxu0 0.0
      %1333 = vmatprep.subr.mxu0 0.0
      %1334 = vmatpush2.msra.mxu0 0.0
      %1335 = vmatprep.subr.mxu0 0.0
      %1336 = vmatpush2.msra.mxu0 0.0
      %1337 = vmatprep.subr.mxu0 0.0
      %1338 = vmatpush2.msra.mxu0 0.0
      %1339 = vmatprep.subr.mxu0 0.0
      %1340 = vmatpush2.msra.mxu0 0.0
      %1341 = vmatprep.subr.mxu0 0.0
      %1342 = vmatpush2.msra.mxu0 0.0
      %1343 = vmatprep.subr.mxu0 0.0
      %1344 = vmatpush2.msra.mxu0 0.0
      %1345 = vmatprep.subr.mxu0 0.0
      %1346 = vmatpush2.msra.mxu0 0.0
      %1347 = vmatprep.subr.mxu0 0.0
      %1348 = vmatpush2.msra.mxu0 0.0
      %1349 = vmatprep.mubr.f32.mxu0 0.0
      %1350 = vmatmul.mubr.f32.gmra.mxu0 %v1259
      %v1351 = vpop.f32.mrf.mxu0
      %v1352 = vadd.f32 0.0, %v1351
      %v1353 = vpop.f32.mrf.mxu0
      %1354 = vmatprep.mubr.f32.mxu0 0.0
      %1355 = vmatmul.mubr.f32.gmra.mxu0 %v1262
      %v1356 = vpop.f32.mrf.mxu0
      %v1357 = vadd.f32 0.0, %v1356
      %v1358 = vpop.f32.mrf.mxu0
      %1359 = vmatprep.mubr.f32.mxu0 0.0
      %1360 = vmatmul.mubr.f32.gmra.mxu0 %v1265
      %v1361 = vpop.f32.mrf.mxu0
      %v1362 = vadd.f32 0.0, %v1361
      %v1363 = vpop.f32.mrf.mxu0
      %1364 = vmatprep.mubr.f32.mxu0 0.0
      %1365 = vmatmul.mubr.f32.gmra.mxu0 %v1268
      %v1366 = vpop.f32.mrf.mxu0
      %v1367 = vadd.f32 0.0, %v1366
      %v1368 = vpop.f32.mrf.mxu0
      %1369 = vmatprep.mubr.f32.mxu0 0.0
      %1370 = vmatmul.mubr.f32.gmra.mxu0 %v1271
      %v1371 = vpop.f32.mrf.mxu0
      %v1372 = vadd.f32 0.0, %v1371
      %v1373 = vpop.f32.mrf.mxu0
      %1374 = vmatprep.mubr.f32.mxu0 0.0
      %1375 = vmatmul.mubr.f32.gmra.mxu0 %v1274
      %v1376 = vpop.f32.mrf.mxu0
      %v1377 = vadd.f32 0.0, %v1376
      %v1378 = vpop.f32.mrf.mxu0
      %1379 = vmatprep.mubr.f32.mxu0 0.0
      %1380 = vmatmul.mubr.f32.gmra.mxu0 %v1277
      %v1381 = vpop.f32.mrf.mxu0
      %v1382 = vadd.f32 0.0, %v1381
      %v1383 = vpop.f32.mrf.mxu0
      %1384 = vmatprep.mubr.f32.mxu0 0.0
      %1385 = vmatmul.mubr.f32.gmra.mxu0 %v1280
      %v1386 = vpop.f32.mrf.mxu0
      %v1387 = vadd.f32 0.0, %v1386
      %v1388 = vpop.f32.mrf.mxu0
      %1389 = vdwg.mxu0
      %v1390 = vadd.f32 %v1240, %v1352
      %v1391 = vadd.f32 %v1241, %v1357
      %v1392 = vadd.f32 %v1242, %v1362
      %v1393 = vadd.f32 %v1243, %v1367
      %v1394 = vadd.f32 %v1244, %v1372
      %v1395 = vadd.f32 %v1245, %v1377
      %v1396 = vadd.f32 %v1246, %v1382
      %v1397 = vadd.f32 %v1247, %v1387
      %v1398 = vld [vmem:[%s797] sm:$0xff]
      %v1399 = vld [vmem:[%s797 + $0x10] sm:$0xff]
      %v1400 = vld [vmem:[%s797 + $0x20] sm:$0xff]
      %v1401 = vld [vmem:[%s797 + $0x30] sm:$0xff]
      %v1402 = vld [vmem:[%s797 + $0x40] sm:$0xff]
      %v1403 = vld [vmem:[%s797 + $0x50] sm:$0xff]
      %v1404 = vld [vmem:[%s797 + $0x60] sm:$0xff]
      %v1405 = vld [vmem:[%s797 + $0x70] sm:$0xff]
      %s1406 = scalar_lea.vmem %s3, 16
      %v1407 = vld [vmem:[%s1406] sm:$0xf]
      %v1409 = vsel %vm373, %v1398, 0
      %v1412 = vsel %vm373, %v1399, 0
      %v1415 = vsel %vm373, %v1400, 0
      %v1418 = vsel %vm373, %v1401, 0
      %v1421 = vsel %vm373, %v1402, 0
      %v1424 = vsel %vm373, %v1403, 0
      %v1427 = vsel %vm373, %v1404, 0
      %v1430 = vsel %vm373, %v1405, 0
      %v1433 = vsel %vm470, %v1407, 0
      %1435 = vmatprep.subr.mxu0 0.0
      %1436 = vmatpush1.msra.mxu0 0.0
      %1437 = vmatprep.subr.mxu0 0.0
      %1438 = vmatpush1.msra.mxu0 0.0
      %1439 = vmatprep.subr.mxu0 0.0
      %1440 = vmatpush1.msra.mxu0 0.0
      %1441 = vmatprep.subr.mxu0 0.0
      %1442 = vmatpush1.msra.mxu0 0.0
      %1443 = vmatprep.subr.mxu0 0.0
      %1444 = vmatpush1.msra.mxu0 0.0
      %1445 = vmatprep.subr.mxu0 0.0
      %1446 = vmatpush1.msra.mxu0 0.0
      %1447 = vmatprep.subr.mxu0 0.0
      %1448 = vmatpush1.msra.mxu0 0.0
      %1449 = vmatprep.subr.mxu0 0.0
      %1450 = vmatpush1.msra.mxu0 0.0
      %1451 = vmatprep.subr.mxu0 0.0
      %1452 = vmatpush1.msra.mxu0 0.0
      %1453 = vmatprep.subr.mxu0 0.0
      %1454 = vmatpush1.msra.mxu0 0.0
      %1455 = vmatprep.subr.mxu0 0.0
      %1456 = vmatpush1.msra.mxu0 0.0
      %1457 = vmatprep.subr.mxu0 0.0
      %1458 = vmatpush1.msra.mxu0 0.0
      %1459 = vmatprep.subr.mxu0 0.0
      %1460 = vmatpush1.msra.mxu0 0.0
      %1461 = vmatprep.subr.mxu0 0.0
      %1462 = vmatpush1.msra.mxu0 0.0
      %1463 = vmatprep.subr.mxu0 0.0
      %1464 = vmatpush1.msra.mxu0 0.0
      %1465 = vmatprep.subr.mxu0 0.0
      %1466 = vmatpush1.msra.mxu0 %v1433
      %1467 = vmatprep.subr.mxu0 0.0
      %1468 = vmatpush2.msra.mxu0 0.0
      %1469 = vmatprep.subr.mxu0 0.0
      %1470 = vmatpush2.msra.mxu0 0.0
      %1471 = vmatprep.subr.mxu0 0.0
      %1472 = vmatpush2.msra.mxu0 0.0
      %1473 = vmatprep.subr.mxu0 0.0
      %1474 = vmatpush2.msra.mxu0 0.0
      %1475 = vmatprep.subr.mxu0 0.0
      %1476 = vmatpush2.msra.mxu0 0.0
      %1477 = vmatprep.subr.mxu0 0.0
      %1478 = vmatpush2.msra.mxu0 0.0
      %1479 = vmatprep.subr.mxu0 0.0
      %1480 = vmatpush2.msra.mxu0 0.0
      %1481 = vmatprep.subr.mxu0 0.0
      %1482 = vmatpush2.msra.mxu0 0.0
      %1483 = vmatprep.subr.mxu0 0.0
      %1484 = vmatpush2.msra.mxu0 0.0
      %1485 = vmatprep.subr.mxu0 0.0
      %1486 = vmatpush2.msra.mxu0 0.0
      %1487 = vmatprep.subr.mxu0 0.0
      %1488 = vmatpush2.msra.mxu0 0.0
      %1489 = vmatprep.subr.mxu0 0.0
      %1490 = vmatpush2.msra.mxu0 0.0
      %1491 = vmatprep.subr.mxu0 0.0
      %1492 = vmatpush2.msra.mxu0 0.0
      %1493 = vmatprep.subr.mxu0 0.0
      %1494 = vmatpush2.msra.mxu0 0.0
      %1495 = vmatprep.subr.mxu0 0.0
      %1496 = vmatpush2.msra.mxu0 0.0
      %1497 = vmatprep.subr.mxu0 0.0
      %1498 = vmatpush2.msra.mxu0 0.0
      %1499 = vmatprep.mubr.f32.mxu0 0.0
      %1500 = vmatmul.mubr.f32.gmra.mxu0 %v1409
      %v1501 = vpop.f32.mrf.mxu0
      %v1502 = vadd.f32 0.0, %v1501
      %v1503 = vpop.f32.mrf.mxu0
      %1504 = vmatprep.mubr.f32.mxu0 0.0
      %1505 = vmatmul.mubr.f32.gmra.mxu0 %v1412
      %v1506 = vpop.f32.mrf.mxu0
      %v1507 = vadd.f32 0.0, %v1506
      %v1508 = vpop.f32.mrf.mxu0
      %1509 = vmatprep.mubr.f32.mxu0 0.0
      %1510 = vmatmul.mubr.f32.gmra.mxu0 %v1415
      %v1511 = vpop.f32.mrf.mxu0
      %v1512 = vadd.f32 0.0, %v1511
      %v1513 = vpop.f32.mrf.mxu0
      %1514 = vmatprep.mubr.f32.mxu0 0.0
      %1515 = vmatmul.mubr.f32.gmra.mxu0 %v1418
      %v1516 = vpop.f32.mrf.mxu0
      %v1517 = vadd.f32 0.0, %v1516
      %v1518 = vpop.f32.mrf.mxu0
      %1519 = vmatprep.mubr.f32.mxu0 0.0
      %1520 = vmatmul.mubr.f32.gmra.mxu0 %v1421
      %v1521 = vpop.f32.mrf.mxu0
      %v1522 = vadd.f32 0.0, %v1521
      %v1523 = vpop.f32.mrf.mxu0
      %1524 = vmatprep.mubr.f32.mxu0 0.0
      %1525 = vmatmul.mubr.f32.gmra.mxu0 %v1424
      %v1526 = vpop.f32.mrf.mxu0
      %v1527 = vadd.f32 0.0, %v1526
      %v1528 = vpop.f32.mrf.mxu0
      %1529 = vmatprep.mubr.f32.mxu0 0.0
      %1530 = vmatmul.mubr.f32.gmra.mxu0 %v1427
      %v1531 = vpop.f32.mrf.mxu0
      %v1532 = vadd.f32 0.0, %v1531
      %v1533 = vpop.f32.mrf.mxu0
      %1534 = vmatprep.mubr.f32.mxu0 0.0
      %1535 = vmatmul.mubr.f32.gmra.mxu0 %v1430
      %v1536 = vpop.f32.mrf.mxu0
      %v1537 = vadd.f32 0.0, %v1536
      %v1538 = vpop.f32.mrf.mxu0
      %1539 = vdwg.mxu0
      %v1540 = vadd.f32 %v1390, %v1502
      %v1541 = vadd.f32 %v1391, %v1507
      %v1542 = vadd.f32 %v1392, %v1512
      %v1543 = vadd.f32 %v1393, %v1517
      %v1544 = vadd.f32 %v1394, %v1522
      %v1545 = vadd.f32 %v1395, %v1527
      %v1546 = vadd.f32 %v1396, %v1532
      %v1547 = vadd.f32 %v1397, %v1537
      %v1548 = vld [vmem:[%s776 + $0x1] sm:$0xff]
      %v1549 = vld [vmem:[%s776 + $0x11] sm:$0xff]
      %v1550 = vld [vmem:[%s776 + $0x21] sm:$0xff]
      %v1551 = vld [vmem:[%s776 + $0x31] sm:$0xff]
      %v1552 = vld [vmem:[%s776 + $0x41] sm:$0xff]
      %v1553 = vld [vmem:[%s776 + $0x51] sm:$0xff]
      %v1554 = vld [vmem:[%s776 + $0x61] sm:$0xff]
      %v1555 = vld [vmem:[%s776 + $0x71] sm:$0xff]
      %s1556 = scalar_lea.vmem %s3, 20
      %v1557 = vld [vmem:[%s1556] sm:$0xf]
      %v1559 = vsel %vm373, %v1548, 0
      %v1562 = vsel %vm373, %v1549, 0
      %v1565 = vsel %vm373, %v1550, 0
      %v1568 = vsel %vm373, %v1551, 0
      %v1571 = vsel %vm373, %v1552, 0
      %v1574 = vsel %vm373, %v1553, 0
      %v1577 = vsel %vm373, %v1554, 0
      %v1580 = vsel %vm373, %v1555, 0
      %v1583 = vsel %vm470, %v1557, 0
      %1585 = vmatprep.subr.mxu0 0.0
      %1586 = vmatpush1.msra.mxu0 0.0
      %1587 = vmatprep.subr.mxu0 0.0
      %1588 = vmatpush1.msra.mxu0 0.0
      %1589 = vmatprep.subr.mxu0 0.0
      %1590 = vmatpush1.msra.mxu0 0.0
      %1591 = vmatprep.subr.mxu0 0.0
      %1592 = vmatpush1.msra.mxu0 0.0
      %1593 = vmatprep.subr.mxu0 0.0
      %1594 = vmatpush1.msra.mxu0 0.0
      %1595 = vmatprep.subr.mxu0 0.0
      %1596 = vmatpush1.msra.mxu0 0.0
      %1597 = vmatprep.subr.mxu0 0.0
      %1598 = vmatpush1.msra.mxu0 0.0
      %1599 = vmatprep.subr.mxu0 0.0
      %1600 = vmatpush1.msra.mxu0 0.0
      %1601 = vmatprep.subr.mxu0 0.0
      %1602 = vmatpush1.msra.mxu0 0.0
      %1603 = vmatprep.subr.mxu0 0.0
      %1604 = vmatpush1.msra.mxu0 0.0
      %1605 = vmatprep.subr.mxu0 0.0
      %1606 = vmatpush1.msra.mxu0 0.0
      %1607 = vmatprep.subr.mxu0 0.0
      %1608 = vmatpush1.msra.mxu0 0.0
      %1609 = vmatprep.subr.mxu0 0.0
      %1610 = vmatpush1.msra.mxu0 0.0
      %1611 = vmatprep.subr.mxu0 0.0
      %1612 = vmatpush1.msra.mxu0 0.0
      %1613 = vmatprep.subr.mxu0 0.0
      %1614 = vmatpush1.msra.mxu0 0.0
      %1615 = vmatprep.subr.mxu0 0.0
      %1616 = vmatpush1.msra.mxu0 %v1583
      %1617 = vmatprep.subr.mxu0 0.0
      %1618 = vmatpush2.msra.mxu0 0.0
      %1619 = vmatprep.subr.mxu0 0.0
      %1620 = vmatpush2.msra.mxu0 0.0
      %1621 = vmatprep.subr.mxu0 0.0
      %1622 = vmatpush2.msra.mxu0 0.0
      %1623 = vmatprep.subr.mxu0 0.0
      %1624 = vmatpush2.msra.mxu0 0.0
      %1625 = vmatprep.subr.mxu0 0.0
      %1626 = vmatpush2.msra.mxu0 0.0
      %1627 = vmatprep.subr.mxu0 0.0
      %1628 = vmatpush2.msra.mxu0 0.0
      %1629 = vmatprep.subr.mxu0 0.0
      %1630 = vmatpush2.msra.mxu0 0.0
      %1631 = vmatprep.subr.mxu0 0.0
      %1632 = vmatpush2.msra.mxu0 0.0
      %1633 = vmatprep.subr.mxu0 0.0
      %1634 = vmatpush2.msra.mxu0 0.0
      %1635 = vmatprep.subr.mxu0 0.0
      %1636 = vmatpush2.msra.mxu0 0.0
      %1637 = vmatprep.subr.mxu0 0.0
      %1638 = vmatpush2.msra.mxu0 0.0
      %1639 = vmatprep.subr.mxu0 0.0
      %1640 = vmatpush2.msra.mxu0 0.0
      %1641 = vmatprep.subr.mxu0 0.0
      %1642 = vmatpush2.msra.mxu0 0.0
      %1643 = vmatprep.subr.mxu0 0.0
      %1644 = vmatpush2.msra.mxu0 0.0
      %1645 = vmatprep.subr.mxu0 0.0
      %1646 = vmatpush2.msra.mxu0 0.0
      %1647 = vmatprep.subr.mxu0 0.0
      %1648 = vmatpush2.msra.mxu0 0.0
      %1649 = vmatprep.mubr.f32.mxu0 0.0
      %1650 = vmatmul.mubr.f32.gmra.mxu0 %v1559
      %v1651 = vpop.f32.mrf.mxu0
      %v1652 = vadd.f32 0.0, %v1651
      %v1653 = vpop.f32.mrf.mxu0
      %1654 = vmatprep.mubr.f32.mxu0 0.0
      %1655 = vmatmul.mubr.f32.gmra.mxu0 %v1562
      %v1656 = vpop.f32.mrf.mxu0
      %v1657 = vadd.f32 0.0, %v1656
      %v1658 = vpop.f32.mrf.mxu0
      %1659 = vmatprep.mubr.f32.mxu0 0.0
      %1660 = vmatmul.mubr.f32.gmra.mxu0 %v1565
      %v1661 = vpop.f32.mrf.mxu0
      %v1662 = vadd.f32 0.0, %v1661
      %v1663 = vpop.f32.mrf.mxu0
      %1664 = vmatprep.mubr.f32.mxu0 0.0
      %1665 = vmatmul.mubr.f32.gmra.mxu0 %v1568
      %v1666 = vpop.f32.mrf.mxu0
      %v1667 = vadd.f32 0.0, %v1666
      %v1668 = vpop.f32.mrf.mxu0
      %1669 = vmatprep.mubr.f32.mxu0 0.0
      %1670 = vmatmul.mubr.f32.gmra.mxu0 %v1571
      %v1671 = vpop.f32.mrf.mxu0
      %v1672 = vadd.f32 0.0, %v1671
      %v1673 = vpop.f32.mrf.mxu0
      %1674 = vmatprep.mubr.f32.mxu0 0.0
      %1675 = vmatmul.mubr.f32.gmra.mxu0 %v1574
      %v1676 = vpop.f32.mrf.mxu0
      %v1677 = vadd.f32 0.0, %v1676
      %v1678 = vpop.f32.mrf.mxu0
      %1679 = vmatprep.mubr.f32.mxu0 0.0
      %1680 = vmatmul.mubr.f32.gmra.mxu0 %v1577
      %v1681 = vpop.f32.mrf.mxu0
      %v1682 = vadd.f32 0.0, %v1681
      %v1683 = vpop.f32.mrf.mxu0
      %1684 = vmatprep.mubr.f32.mxu0 0.0
      %1685 = vmatmul.mubr.f32.gmra.mxu0 %v1580
      %v1686 = vpop.f32.mrf.mxu0
      %v1687 = vadd.f32 0.0, %v1686
      %v1688 = vpop.f32.mrf.mxu0
      %1689 = vdwg.mxu0
      %v1690 = vadd.f32 %v1540, %v1652
      %v1691 = vadd.f32 %v1541, %v1657
      %v1692 = vadd.f32 %v1542, %v1662
      %v1693 = vadd.f32 %v1543, %v1667
      %v1694 = vadd.f32 %v1544, %v1672
      %v1695 = vadd.f32 %v1545, %v1677
      %v1696 = vadd.f32 %v1546, %v1682
      %v1697 = vadd.f32 %v1547, %v1687
      %v1698 = vld [vmem:[%s743] sm:$0xff]
      %v1699 = vld [vmem:[%s743 + $0x10] sm:$0xff]
      %v1700 = vld [vmem:[%s743 + $0x20] sm:$0xff]
      %v1701 = vld [vmem:[%s743 + $0x30] sm:$0xff]
      %v1702 = vld [vmem:[%s743 + $0x40] sm:$0xff]
      %v1703 = vld [vmem:[%s743 + $0x50] sm:$0xff]
      %v1704 = vld [vmem:[%s743 + $0x60] sm:$0xff]
      %v1705 = vld [vmem:[%s743 + $0x70] sm:$0xff]
      %s1706 = scalar_lea.vmem %s3, 24
      %v1707 = vld [vmem:[%s1706] sm:$0xf]
      %v1709 = vsel %vm373, %v1698, 0
      %v1712 = vsel %vm373, %v1699, 0
      %v1715 = vsel %vm373, %v1700, 0
      %v1718 = vsel %vm373, %v1701, 0
      %v1721 = vsel %vm373, %v1702, 0
      %v1724 = vsel %vm373, %v1703, 0
      %v1727 = vsel %vm373, %v1704, 0
      %v1730 = vsel %vm373, %v1705, 0
      %v1733 = vsel %vm470, %v1707, 0
      %1735 = vmatprep.subr.mxu0 0.0
      %1736 = vmatpush1.msra.mxu0 0.0
      %1737 = vmatprep.subr.mxu0 0.0
      %1738 = vmatpush1.msra.mxu0 0.0
      %1739 = vmatprep.subr.mxu0 0.0
      %1740 = vmatpush1.msra.mxu0 0.0
      %1741 = vmatprep.subr.mxu0 0.0
      %1742 = vmatpush1.msra.mxu0 0.0
      %1743 = vmatprep.subr.mxu0 0.0
      %1744 = vmatpush1.msra.mxu0 0.0
      %1745 = vmatprep.subr.mxu0 0.0
      %1746 = vmatpush1.msra.mxu0 0.0
      %1747 = vmatprep.subr.mxu0 0.0
      %1748 = vmatpush1.msra.mxu0 0.0
      %1749 = vmatprep.subr.mxu0 0.0
      %1750 = vmatpush1.msra.mxu0 0.0
      %1751 = vmatprep.subr.mxu0 0.0
      %1752 = vmatpush1.msra.mxu0 0.0
      %1753 = vmatprep.subr.mxu0 0.0
      %1754 = vmatpush1.msra.mxu0 0.0
      %1755 = vmatprep.subr.mxu0 0.0
      %1756 = vmatpush1.msra.mxu0 0.0
      %1757 = vmatprep.subr.mxu0 0.0
      %1758 = vmatpush1.msra.mxu0 0.0
      %1759 = vmatprep.subr.mxu0 0.0
      %1760 = vmatpush1.msra.mxu0 0.0
      %1761 = vmatprep.subr.mxu0 0.0
      %1762 = vmatpush1.msra.mxu0 0.0
      %1763 = vmatprep.subr.mxu0 0.0
      %1764 = vmatpush1.msra.mxu0 0.0
      %1765 = vmatprep.subr.mxu0 0.0
      %1766 = vmatpush1.msra.mxu0 %v1733
      %1767 = vmatprep.subr.mxu0 0.0
      %1768 = vmatpush2.msra.mxu0 0.0
      %1769 = vmatprep.subr.mxu0 0.0
      %1770 = vmatpush2.msra.mxu0 0.0
      %1771 = vmatprep.subr.mxu0 0.0
      %1772 = vmatpush2.msra.mxu0 0.0
      %1773 = vmatprep.subr.mxu0 0.0
      %1774 = vmatpush2.msra.mxu0 0.0
      %1775 = vmatprep.subr.mxu0 0.0
      %1776 = vmatpush2.msra.mxu0 0.0
      %1777 = vmatprep.subr.mxu0 0.0
      %1778 = vmatpush2.msra.mxu0 0.0
      %1779 = vmatprep.subr.mxu0 0.0
      %1780 = vmatpush2.msra.mxu0 0.0
      %1781 = vmatprep.subr.mxu0 0.0
      %1782 = vmatpush2.msra.mxu0 0.0
      %1783 = vmatprep.subr.mxu0 0.0
      %1784 = vmatpush2.msra.mxu0 0.0
      %1785 = vmatprep.subr.mxu0 0.0
      %1786 = vmatpush2.msra.mxu0 0.0
      %1787 = vmatprep.subr.mxu0 0.0
      %1788 = vmatpush2.msra.mxu0 0.0
      %1789 = vmatprep.subr.mxu0 0.0
      %1790 = vmatpush2.msra.mxu0 0.0
      %1791 = vmatprep.subr.mxu0 0.0
      %1792 = vmatpush2.msra.mxu0 0.0
      %1793 = vmatprep.subr.mxu0 0.0
      %1794 = vmatpush2.msra.mxu0 0.0
      %1795 = vmatprep.subr.mxu0 0.0
      %1796 = vmatpush2.msra.mxu0 0.0
      %1797 = vmatprep.subr.mxu0 0.0
      %1798 = vmatpush2.msra.mxu0 0.0
      %1799 = vmatprep.mubr.f32.mxu0 0.0
      %1800 = vmatmul.mubr.f32.gmra.mxu0 %v1709
      %v1801 = vpop.f32.mrf.mxu0
      %v1802 = vadd.f32 0.0, %v1801
      %v1803 = vpop.f32.mrf.mxu0
      %1804 = vmatprep.mubr.f32.mxu0 0.0
      %1805 = vmatmul.mubr.f32.gmra.mxu0 %v1712
      %v1806 = vpop.f32.mrf.mxu0
      %v1807 = vadd.f32 0.0, %v1806
      %v1808 = vpop.f32.mrf.mxu0
      %1809 = vmatprep.mubr.f32.mxu0 0.0
      %1810 = vmatmul.mubr.f32.gmra.mxu0 %v1715
      %v1811 = vpop.f32.mrf.mxu0
      %v1812 = vadd.f32 0.0, %v1811
      %v1813 = vpop.f32.mrf.mxu0
      %1814 = vmatprep.mubr.f32.mxu0 0.0
      %1815 = vmatmul.mubr.f32.gmra.mxu0 %v1718
      %v1816 = vpop.f32.mrf.mxu0
      %v1817 = vadd.f32 0.0, %v1816
      %v1818 = vpop.f32.mrf.mxu0
      %1819 = vmatprep.mubr.f32.mxu0 0.0
      %1820 = vmatmul.mubr.f32.gmra.mxu0 %v1721
      %v1821 = vpop.f32.mrf.mxu0
      %v1822 = vadd.f32 0.0, %v1821
      %v1823 = vpop.f32.mrf.mxu0
      %1824 = vmatprep.mubr.f32.mxu0 0.0
      %1825 = vmatmul.mubr.f32.gmra.mxu0 %v1724
      %v1826 = vpop.f32.mrf.mxu0
      %v1827 = vadd.f32 0.0, %v1826
      %v1828 = vpop.f32.mrf.mxu0
      %1829 = vmatprep.mubr.f32.mxu0 0.0
      %1830 = vmatmul.mubr.f32.gmra.mxu0 %v1727
      %v1831 = vpop.f32.mrf.mxu0
      %v1832 = vadd.f32 0.0, %v1831
      %v1833 = vpop.f32.mrf.mxu0
      %1834 = vmatprep.mubr.f32.mxu0 0.0
      %1835 = vmatmul.mubr.f32.gmra.mxu0 %v1730
      %v1836 = vpop.f32.mrf.mxu0
      %v1837 = vadd.f32 0.0, %v1836
      %v1838 = vpop.f32.mrf.mxu0
      %1839 = vdwg.mxu0
      %v1840 = vadd.f32 %v1690, %v1802
      %v1841 = vadd.f32 %v1691, %v1807
      %v1842 = vadd.f32 %v1692, %v1812
      %v1843 = vadd.f32 %v1693, %v1817
      %v1844 = vadd.f32 %v1694, %v1822
      %v1845 = vadd.f32 %v1695, %v1827
      %v1846 = vadd.f32 %v1696, %v1832
      %v1847 = vadd.f32 %v1697, %v1837
      %v1848 = vld [vmem:[%s764] sm:$0xff]
      %v1849 = vld [vmem:[%s764 + $0x10] sm:$0xff]
      %v1850 = vld [vmem:[%s764 + $0x20] sm:$0xff]
      %v1851 = vld [vmem:[%s764 + $0x30] sm:$0xff]
      %v1852 = vld [vmem:[%s764 + $0x40] sm:$0xff]
      %v1853 = vld [vmem:[%s764 + $0x50] sm:$0xff]
      %v1854 = vld [vmem:[%s764 + $0x60] sm:$0xff]
      %v1855 = vld [vmem:[%s764 + $0x70] sm:$0xff]
      %s1856 = scalar_lea.vmem %s3, 28
      %v1857 = vld [vmem:[%s1856] sm:$0xf]
      %v1859 = vsel %vm373, %v1848, 0
      %v1862 = vsel %vm373, %v1849, 0
      %v1865 = vsel %vm373, %v1850, 0
      %v1868 = vsel %vm373, %v1851, 0
      %v1871 = vsel %vm373, %v1852, 0
      %v1874 = vsel %vm373, %v1853, 0
      %v1877 = vsel %vm373, %v1854, 0
      %v1880 = vsel %vm373, %v1855, 0
      %v1883 = vsel %vm470, %v1857, 0
      %1885 = vmatprep.subr.mxu0 0.0
      %1886 = vmatpush1.msra.mxu0 0.0
      %1887 = vmatprep.subr.mxu0 0.0
      %1888 = vmatpush1.msra.mxu0 0.0
      %1889 = vmatprep.subr.mxu0 0.0
      %1890 = vmatpush1.msra.mxu0 0.0
      %1891 = vmatprep.subr.mxu0 0.0
      %1892 = vmatpush1.msra.mxu0 0.0
      %1893 = vmatprep.subr.mxu0 0.0
      %1894 = vmatpush1.msra.mxu0 0.0
      %1895 = vmatprep.subr.mxu0 0.0
      %1896 = vmatpush1.msra.mxu0 0.0
      %1897 = vmatprep.subr.mxu0 0.0
      %1898 = vmatpush1.msra.mxu0 0.0
      %1899 = vmatprep.subr.mxu0 0.0
      %1900 = vmatpush1.msra.mxu0 0.0
      %1901 = vmatprep.subr.mxu0 0.0
      %1902 = vmatpush1.msra.mxu0 0.0
      %1903 = vmatprep.subr.mxu0 0.0
      %1904 = vmatpush1.msra.mxu0 0.0
      %1905 = vmatprep.subr.mxu0 0.0
      %1906 = vmatpush1.msra.mxu0 0.0
      %1907 = vmatprep.subr.mxu0 0.0
      %1908 = vmatpush1.msra.mxu0 0.0
      %1909 = vmatprep.subr.mxu0 0.0
      %1910 = vmatpush1.msra.mxu0 0.0
      %1911 = vmatprep.subr.mxu0 0.0
      %1912 = vmatpush1.msra.mxu0 0.0
      %1913 = vmatprep.subr.mxu0 0.0
      %1914 = vmatpush1.msra.mxu0 0.0
      %1915 = vmatprep.subr.mxu0 0.0
      %1916 = vmatpush1.msra.mxu0 %v1883
      %1917 = vmatprep.subr.mxu0 0.0
      %1918 = vmatpush2.msra.mxu0 0.0
      %1919 = vmatprep.subr.mxu0 0.0
      %1920 = vmatpush2.msra.mxu0 0.0
      %1921 = vmatprep.subr.mxu0 0.0
      %1922 = vmatpush2.msra.mxu0 0.0
      %1923 = vmatprep.subr.mxu0 0.0
      %1924 = vmatpush2.msra.mxu0 0.0
      %1925 = vmatprep.subr.mxu0 0.0
      %1926 = vmatpush2.msra.mxu0 0.0
      %1927 = vmatprep.subr.mxu0 0.0
      %1928 = vmatpush2.msra.mxu0 0.0
      %1929 = vmatprep.subr.mxu0 0.0
      %1930 = vmatpush2.msra.mxu0 0.0
      %1931 = vmatprep.subr.mxu0 0.0
      %1932 = vmatpush2.msra.mxu0 0.0
      %1933 = vmatprep.subr.mxu0 0.0
      %1934 = vmatpush2.msra.mxu0 0.0
      %1935 = vmatprep.subr.mxu0 0.0
      %1936 = vmatpush2.msra.mxu0 0.0
      %1937 = vmatprep.subr.mxu0 0.0
      %1938 = vmatpush2.msra.mxu0 0.0
      %1939 = vmatprep.subr.mxu0 0.0
      %1940 = vmatpush2.msra.mxu0 0.0
      %1941 = vmatprep.subr.mxu0 0.0
      %1942 = vmatpush2.msra.mxu0 0.0
      %1943 = vmatprep.subr.mxu0 0.0
      %1944 = vmatpush2.msra.mxu0 0.0
      %1945 = vmatprep.subr.mxu0 0.0
      %1946 = vmatpush2.msra.mxu0 0.0
      %1947 = vmatprep.subr.mxu0 0.0
      %1948 = vmatpush2.msra.mxu0 0.0
      %1949 = vmatprep.mubr.f32.mxu0 0.0
      %1950 = vmatmul.mubr.f32.gmra.mxu0 %v1859
      %v1951 = vpop.f32.mrf.mxu0
      %v1952 = vadd.f32 0.0, %v1951
      %v1953 = vpop.f32.mrf.mxu0
      %1954 = vmatprep.mubr.f32.mxu0 0.0
      %1955 = vmatmul.mubr.f32.gmra.mxu0 %v1862
      %v1956 = vpop.f32.mrf.mxu0
      %v1957 = vadd.f32 0.0, %v1956
      %v1958 = vpop.f32.mrf.mxu0
      %1959 = vmatprep.mubr.f32.mxu0 0.0
      %1960 = vmatmul.mubr.f32.gmra.mxu0 %v1865
      %v1961 = vpop.f32.mrf.mxu0
      %v1962 = vadd.f32 0.0, %v1961
      %v1963 = vpop.f32.mrf.mxu0
      %1964 = vmatprep.mubr.f32.mxu0 0.0
      %1965 = vmatmul.mubr.f32.gmra.mxu0 %v1868
      %v1966 = vpop.f32.mrf.mxu0
      %v1967 = vadd.f32 0.0, %v1966
      %v1968 = vpop.f32.mrf.mxu0
      %1969 = vmatprep.mubr.f32.mxu0 0.0
      %1970 = vmatmul.mubr.f32.gmra.mxu0 %v1871
      %v1971 = vpop.f32.mrf.mxu0
      %v1972 = vadd.f32 0.0, %v1971
      %v1973 = vpop.f32.mrf.mxu0
      %1974 = vmatprep.mubr.f32.mxu0 0.0
      %1975 = vmatmul.mubr.f32.gmra.mxu0 %v1874
      %v1976 = vpop.f32.mrf.mxu0
      %v1977 = vadd.f32 0.0, %v1976
      %v1978 = vpop.f32.mrf.mxu0
      %1979 = vmatprep.mubr.f32.mxu0 0.0
      %1980 = vmatmul.mubr.f32.gmra.mxu0 %v1877
      %v1981 = vpop.f32.mrf.mxu0
      %v1982 = vadd.f32 0.0, %v1981
      %v1983 = vpop.f32.mrf.mxu0
      %1984 = vmatprep.mubr.f32.mxu0 0.0
      %1985 = vmatmul.mubr.f32.gmra.mxu0 %v1880
      %v1986 = vpop.f32.mrf.mxu0
      %v1987 = vadd.f32 0.0, %v1986
      %v1988 = vpop.f32.mrf.mxu0
      %1989 = vdwg.mxu0
      %v1990 = vadd.f32 %v1840, %v1952
      %v1991 = vadd.f32 %v1841, %v1957
      %v1992 = vadd.f32 %v1842, %v1962
      %v1993 = vadd.f32 %v1843, %v1967
      %v1994 = vadd.f32 %v1844, %v1972
      %v1995 = vadd.f32 %v1845, %v1977
      %v1996 = vadd.f32 %v1846, %v1982
      %v1997 = vadd.f32 %v1847, %v1987
      %v1998 = vld [vmem:[%s743 + $0x1] sm:$0xff]
      %v1999 = vld [vmem:[%s743 + $0x11] sm:$0xff]
      %v2000 = vld [vmem:[%s743 + $0x21] sm:$0xff]
      %v2001 = vld [vmem:[%s743 + $0x31] sm:$0xff]
      %v2002 = vld [vmem:[%s743 + $0x41] sm:$0xff]
      %v2003 = vld [vmem:[%s743 + $0x51] sm:$0xff]
      %v2004 = vld [vmem:[%s743 + $0x61] sm:$0xff]
      %v2005 = vld [vmem:[%s743 + $0x71] sm:$0xff]
      %s2006 = scalar_lea.vmem %s3, 32
      %v2007 = vld [vmem:[%s2006] sm:$0xf]
      %v2009 = vsel %vm373, %v1998, 0
      %v2012 = vsel %vm373, %v1999, 0
      %v2015 = vsel %vm373, %v2000, 0
      %v2018 = vsel %vm373, %v2001, 0
      %v2021 = vsel %vm373, %v2002, 0
      %v2024 = vsel %vm373, %v2003, 0
      %v2027 = vsel %vm373, %v2004, 0
      %v2030 = vsel %vm373, %v2005, 0
      %v2033 = vsel %vm470, %v2007, 0
      %2035 = vmatprep.subr.mxu0 0.0
      %2036 = vmatpush1.msra.mxu0 0.0
      %2037 = vmatprep.subr.mxu0 0.0
      %2038 = vmatpush1.msra.mxu0 0.0
      %2039 = vmatprep.subr.mxu0 0.0
      %2040 = vmatpush1.msra.mxu0 0.0
      %2041 = vmatprep.subr.mxu0 0.0
      %2042 = vmatpush1.msra.mxu0 0.0
      %2043 = vmatprep.subr.mxu0 0.0
      %2044 = vmatpush1.msra.mxu0 0.0
      %2045 = vmatprep.subr.mxu0 0.0
      %2046 = vmatpush1.msra.mxu0 0.0
      %2047 = vmatprep.subr.mxu0 0.0
      %2048 = vmatpush1.msra.mxu0 0.0
      %2049 = vmatprep.subr.mxu0 0.0
      %2050 = vmatpush1.msra.mxu0 0.0
      %2051 = vmatprep.subr.mxu0 0.0
      %2052 = vmatpush1.msra.mxu0 0.0
      %2053 = vmatprep.subr.mxu0 0.0
      %2054 = vmatpush1.msra.mxu0 0.0
      %2055 = vmatprep.subr.mxu0 0.0
      %2056 = vmatpush1.msra.mxu0 0.0
      %2057 = vmatprep.subr.mxu0 0.0
      %2058 = vmatpush1.msra.mxu0 0.0
      %2059 = vmatprep.subr.mxu0 0.0
      %2060 = vmatpush1.msra.mxu0 0.0
      %2061 = vmatprep.subr.mxu0 0.0
      %2062 = vmatpush1.msra.mxu0 0.0
      %2063 = vmatprep.subr.mxu0 0.0
      %2064 = vmatpush1.msra.mxu0 0.0
      %2065 = vmatprep.subr.mxu0 0.0
      %2066 = vmatpush1.msra.mxu0 %v2033
      %2067 = vmatprep.subr.mxu0 0.0
      %2068 = vmatpush2.msra.mxu0 0.0
      %2069 = vmatprep.subr.mxu0 0.0
      %2070 = vmatpush2.msra.mxu0 0.0
      %2071 = vmatprep.subr.mxu0 0.0
      %2072 = vmatpush2.msra.mxu0 0.0
      %2073 = vmatprep.subr.mxu0 0.0
      %2074 = vmatpush2.msra.mxu0 0.0
      %2075 = vmatprep.subr.mxu0 0.0
      %2076 = vmatpush2.msra.mxu0 0.0
      %2077 = vmatprep.subr.mxu0 0.0
      %2078 = vmatpush2.msra.mxu0 0.0
      %2079 = vmatprep.subr.mxu0 0.0
      %2080 = vmatpush2.msra.mxu0 0.0
      %2081 = vmatprep.subr.mxu0 0.0
      %2082 = vmatpush2.msra.mxu0 0.0
      %2083 = vmatprep.subr.mxu0 0.0
      %2084 = vmatpush2.msra.mxu0 0.0
      %2085 = vmatprep.subr.mxu0 0.0
      %2086 = vmatpush2.msra.mxu0 0.0
      %2087 = vmatprep.subr.mxu0 0.0
      %2088 = vmatpush2.msra.mxu0 0.0
      %2089 = vmatprep.subr.mxu0 0.0
      %2090 = vmatpush2.msra.mxu0 0.0
      %2091 = vmatprep.subr.mxu0 0.0
      %2092 = vmatpush2.msra.mxu0 0.0
      %2093 = vmatprep.subr.mxu0 0.0
      %2094 = vmatpush2.msra.mxu0 0.0
      %2095 = vmatprep.subr.mxu0 0.0
      %2096 = vmatpush2.msra.mxu0 0.0
      %2097 = vmatprep.subr.mxu0 0.0
      %2098 = vmatpush2.msra.mxu0 0.0
      %2099 = vmatprep.mubr.f32.mxu0 0.0
      %2100 = vmatmul.mubr.f32.gmra.mxu0 %v2009
      %v2101 = vpop.f32.mrf.mxu0
      %v2102 = vadd.f32 0.0, %v2101
      %v2103 = vpop.f32.mrf.mxu0
      %2104 = vmatprep.mubr.f32.mxu0 0.0
      %2105 = vmatmul.mubr.f32.gmra.mxu0 %v2012
      %v2106 = vpop.f32.mrf.mxu0
      %v2107 = vadd.f32 0.0, %v2106
      %v2108 = vpop.f32.mrf.mxu0
      %2109 = vmatprep.mubr.f32.mxu0 0.0
      %2110 = vmatmul.mubr.f32.gmra.mxu0 %v2015
      %v2111 = vpop.f32.mrf.mxu0
      %v2112 = vadd.f32 0.0, %v2111
      %v2113 = vpop.f32.mrf.mxu0
      %2114 = vmatprep.mubr.f32.mxu0 0.0
      %2115 = vmatmul.mubr.f32.gmra.mxu0 %v2018
      %v2116 = vpop.f32.mrf.mxu0
      %v2117 = vadd.f32 0.0, %v2116
      %v2118 = vpop.f32.mrf.mxu0
      %2119 = vmatprep.mubr.f32.mxu0 0.0
      %2120 = vmatmul.mubr.f32.gmra.mxu0 %v2021
      %v2121 = vpop.f32.mrf.mxu0
      %v2122 = vadd.f32 0.0, %v2121
      %v2123 = vpop.f32.mrf.mxu0
      %2124 = vmatprep.mubr.f32.mxu0 0.0
      %2125 = vmatmul.mubr.f32.gmra.mxu0 %v2024
      %v2126 = vpop.f32.mrf.mxu0
      %v2127 = vadd.f32 0.0, %v2126
      %v2128 = vpop.f32.mrf.mxu0
      %2129 = vmatprep.mubr.f32.mxu0 0.0
      %2130 = vmatmul.mubr.f32.gmra.mxu0 %v2027
      %v2131 = vpop.f32.mrf.mxu0
      %v2132 = vadd.f32 0.0, %v2131
      %v2133 = vpop.f32.mrf.mxu0
      %2134 = vmatprep.mubr.f32.mxu0 0.0
      %2135 = vmatmul.mubr.f32.gmra.mxu0 %v2030
      %v2136 = vpop.f32.mrf.mxu0
      %v2137 = vadd.f32 0.0, %v2136
      %v2138 = vpop.f32.mrf.mxu0
      %2139 = vdwg.mxu0
      %v2140 = vadd.f32 %v1990, %v2102
      %v2141 = vadd.f32 %v1991, %v2107
      %v2142 = vadd.f32 %v1992, %v2112
      %v2143 = vadd.f32 %v1993, %v2117
      %v2144 = vadd.f32 %v1994, %v2122
      %v2145 = vadd.f32 %v1995, %v2127
      %v2146 = vadd.f32 %v1996, %v2132
      %v2147 = vadd.f32 %v1997, %v2137
      %v2148 = vld [vmem:[%s4] sm:$0x1]
      %v2150 = vlaneseq
      %v2151 = vshrl.u32 %v2150, 7
      %v2152 = vsub.s32 0, %v2151
      %v2153 = vrot.slane %v2148, %v2152
      %v2155 = vadd.f32 %v2140, %v2153
      %v2156 = vadd.f32 %v2141, %v2153
      %v2157 = vadd.f32 %v2142, %v2153
      %v2158 = vadd.f32 %v2143, %v2153
      %v2159 = vadd.f32 %v2144, %v2153
      %v2160 = vadd.f32 %v2145, %v2153
      %v2161 = vadd.f32 %v2146, %v2153
      %v2162 = vadd.f32 %v2147, %v2153
      %v2163 = vmax.f32 %v2155, 0.0
      %v2164 = vmax.f32 %v2156, 0.0
      %v2165 = vmax.f32 %v2157, 0.0
      %v2166 = vmax.f32 %v2158, 0.0
      %v2167 = vmax.f32 %v2159, 0.0
      %v2168 = vmax.f32 %v2160, 0.0
      %v2169 = vmax.f32 %v2161, 0.0
      %v2170 = vmax.f32 %v2162, 0.0
      %v2171 = vld [vmem:[%s5] sm:$0xf]
      %v2172 = vld [vmem:[%s6] sm:$0x1]
      %v2174 = vlaneseq
      %v2175 = vshrl.u32 %v2174, 7
      %v2176 = vsub.s32 0, %v2175
      %v2177 = vrot.slane %v2172, %v2176
      %v2180 = vsel %vm373, %v2163, 0
      %v2183 = vsel %vm373, %v2164, 0
      %v2186 = vsel %vm373, %v2165, 0
      %v2189 = vsel %vm373, %v2166, 0
      %v2192 = vsel %vm373, %v2167, 0
      %v2195 = vsel %vm373, %v2168, 0
      %v2198 = vsel %vm373, %v2169, 0
      %v2201 = vsel %vm373, %v2170, 0
      %v2204 = vsel %vm470, %v2171, 0
      %2206 = vmatprep.subr.mxu0 0.0
      %2207 = vmatpush1.msra.mxu0 0.0
      %2208 = vmatprep.subr.mxu0 0.0
      %2209 = vmatpush1.msra.mxu0 0.0
      %2210 = vmatprep.subr.mxu0 0.0
      %2211 = vmatpush1.msra.mxu0 0.0
      %2212 = vmatprep.subr.mxu0 0.0
      %2213 = vmatpush1.msra.mxu0 0.0
      %2214 = vmatprep.subr.mxu0 0.0
      %2215 = vmatpush1.msra.mxu0 0.0
      %2216 = vmatprep.subr.mxu0 0.0
      %2217 = vmatpush1.msra.mxu0 0.0
      %2218 = vmatprep.subr.mxu0 0.0
      %2219 = vmatpush1.msra.mxu0 0.0
      %2220 = vmatprep.subr.mxu0 0.0
      %2221 = vmatpush1.msra.mxu0 0.0
      %2222 = vmatprep.subr.mxu0 0.0
      %2223 = vmatpush1.msra.mxu0 0.0
      %2224 = vmatprep.subr.mxu0 0.0
      %2225 = vmatpush1.msra.mxu0 0.0
      %2226 = vmatprep.subr.mxu0 0.0
      %2227 = vmatpush1.msra.mxu0 0.0
      %2228 = vmatprep.subr.mxu0 0.0
      %2229 = vmatpush1.msra.mxu0 0.0
      %2230 = vmatprep.subr.mxu0 0.0
      %2231 = vmatpush1.msra.mxu0 0.0
      %2232 = vmatprep.subr.mxu0 0.0
      %2233 = vmatpush1.msra.mxu0 0.0
      %2234 = vmatprep.subr.mxu0 0.0
      %2235 = vmatpush1.msra.mxu0 0.0
      %2236 = vmatprep.subr.mxu0 0.0
      %2237 = vmatpush1.msra.mxu0 %v2204
      %2238 = vmatprep.subr.mxu0 0.0
      %2239 = vmatpush2.msra.mxu0 0.0
      %2240 = vmatprep.subr.mxu0 0.0
      %2241 = vmatpush2.msra.mxu0 0.0
      %2242 = vmatprep.subr.mxu0 0.0
      %2243 = vmatpush2.msra.mxu0 0.0
      %2244 = vmatprep.subr.mxu0 0.0
      %2245 = vmatpush2.msra.mxu0 0.0
      %2246 = vmatprep.subr.mxu0 0.0
      %2247 = vmatpush2.msra.mxu0 0.0
      %2248 = vmatprep.subr.mxu0 0.0
      %2249 = vmatpush2.msra.mxu0 0.0
      %2250 = vmatprep.subr.mxu0 0.0
      %2251 = vmatpush2.msra.mxu0 0.0
      %2252 = vmatprep.subr.mxu0 0.0
      %2253 = vmatpush2.msra.mxu0 0.0
      %2254 = vmatprep.subr.mxu0 0.0
      %2255 = vmatpush2.msra.mxu0 0.0
      %2256 = vmatprep.subr.mxu0 0.0
      %2257 = vmatpush2.msra.mxu0 0.0
      %2258 = vmatprep.subr.mxu0 0.0
      %2259 = vmatpush2.msra.mxu0 0.0
      %2260 = vmatprep.subr.mxu0 0.0
      %2261 = vmatpush2.msra.mxu0 0.0
      %2262 = vmatprep.subr.mxu0 0.0
      %2263 = vmatpush2.msra.mxu0 0.0
      %2264 = vmatprep.subr.mxu0 0.0
      %2265 = vmatpush2.msra.mxu0 0.0
      %2266 = vmatprep.subr.mxu0 0.0
      %2267 = vmatpush2.msra.mxu0 0.0
      %2268 = vmatprep.subr.mxu0 0.0
      %2269 = vmatpush2.msra.mxu0 0.0
      %2270 = vmatprep.mubr.f32.mxu0 0.0
      %2271 = vmatmul.mubr.f32.gmra.mxu0 %v2180
      %v2272 = vpop.f32.mrf.mxu0
      %v2273 = vadd.f32 %v2177, %v2272
      %v2274 = vpop.f32.mrf.mxu0
      %2275 = vmatprep.mubr.f32.mxu0 0.0
      %2276 = vmatmul.mubr.f32.gmra.mxu0 %v2183
      %v2277 = vpop.f32.mrf.mxu0
      %v2278 = vadd.f32 %v2177, %v2277
      %v2279 = vpop.f32.mrf.mxu0
      %2280 = vmatprep.mubr.f32.mxu0 0.0
      %2281 = vmatmul.mubr.f32.gmra.mxu0 %v2186
      %v2282 = vpop.f32.mrf.mxu0
      %v2283 = vadd.f32 %v2177, %v2282
      %v2284 = vpop.f32.mrf.mxu0
      %2285 = vmatprep.mubr.f32.mxu0 0.0
      %2286 = vmatmul.mubr.f32.gmra.mxu0 %v2189
      %v2287 = vpop.f32.mrf.mxu0
      %v2288 = vadd.f32 %v2177, %v2287
      %v2289 = vpop.f32.mrf.mxu0
      %2290 = vmatprep.mubr.f32.mxu0 0.0
      %2291 = vmatmul.mubr.f32.gmra.mxu0 %v2192
      %v2292 = vpop.f32.mrf.mxu0
      %v2293 = vadd.f32 %v2177, %v2292
      %v2294 = vpop.f32.mrf.mxu0
      %2295 = vmatprep.mubr.f32.mxu0 0.0
      %2296 = vmatmul.mubr.f32.gmra.mxu0 %v2195
      %v2297 = vpop.f32.mrf.mxu0
      %v2298 = vadd.f32 %v2177, %v2297
      %v2299 = vpop.f32.mrf.mxu0
      %2300 = vmatprep.mubr.f32.mxu0 0.0
      %2301 = vmatmul.mubr.f32.gmra.mxu0 %v2198
      %v2302 = vpop.f32.mrf.mxu0
      %v2303 = vadd.f32 %v2177, %v2302
      %v2304 = vpop.f32.mrf.mxu0
      %2305 = vmatprep.mubr.f32.mxu0 0.0
      %2306 = vmatmul.mubr.f32.gmra.mxu0 %v2201
      %v2307 = vpop.f32.mrf.mxu0
      %v2308 = vadd.f32 %v2177, %v2307
      %v2309 = vpop.f32.mrf.mxu0
      %2310 = vdwg.mxu0
      %v2311 = vmax.f32 %v2273, 0.0
      %v2312 = vmax.f32 %v2278, 0.0
      %v2313 = vmax.f32 %v2283, 0.0
      %v2314 = vmax.f32 %v2288, 0.0
      %v2315 = vmax.f32 %v2293, 0.0
      %v2316 = vmax.f32 %v2298, 0.0
      %v2317 = vmax.f32 %v2303, 0.0
      %v2318 = vmax.f32 %v2308, 0.0
      %v2319 = vld [vmem:[%s7] sm:$0xf]
      %v2320 = vld [vmem:[%s8] sm:$0x1]
      %v2322 = vlaneseq
      %v2323 = vshrl.u32 %v2322, 7
      %v2324 = vsub.s32 0, %v2323
      %v2325 = vrot.slane %v2320, %v2324
      %v2328 = vsel %vm470, %v2319, 0
      %2330 = vmatprep.subr.mxu0 0.0
      %2331 = vmatpush1.msra.mxu0 0.0
      %2332 = vmatprep.subr.mxu0 0.0
      %2333 = vmatpush1.msra.mxu0 0.0
      %2334 = vmatprep.subr.mxu0 0.0
      %2335 = vmatpush1.msra.mxu0 0.0
      %2336 = vmatprep.subr.mxu0 0.0
      %2337 = vmatpush1.msra.mxu0 0.0
      %2338 = vmatprep.subr.mxu0 0.0
      %2339 = vmatpush1.msra.mxu0 0.0
      %2340 = vmatprep.subr.mxu0 0.0
      %2341 = vmatpush1.msra.mxu0 0.0
      %2342 = vmatprep.subr.mxu0 0.0
      %2343 = vmatpush1.msra.mxu0 0.0
      %2344 = vmatprep.subr.mxu0 0.0
      %2345 = vmatpush1.msra.mxu0 0.0
      %2346 = vmatprep.subr.mxu0 0.0
      %2347 = vmatpush1.msra.mxu0 0.0
      %2348 = vmatprep.subr.mxu0 0.0
      %2349 = vmatpush1.msra.mxu0 0.0
      %2350 = vmatprep.subr.mxu0 0.0
      %2351 = vmatpush1.msra.mxu0 0.0
      %2352 = vmatprep.subr.mxu0 0.0
      %2353 = vmatpush1.msra.mxu0 0.0
      %2354 = vmatprep.subr.mxu0 0.0
      %2355 = vmatpush1.msra.mxu0 0.0
      %2356 = vmatprep.subr.mxu0 0.0
      %2357 = vmatpush1.msra.mxu0 0.0
      %2358 = vmatprep.subr.mxu0 0.0
      %2359 = vmatpush1.msra.mxu0 0.0
      %2360 = vmatprep.subr.mxu0 0.0
      %2361 = vmatpush1.msra.mxu0 %v2328
      %2362 = vmatprep.subr.mxu0 0.0
      %2363 = vmatpush2.msra.mxu0 0.0
      %2364 = vmatprep.subr.mxu0 0.0
      %2365 = vmatpush2.msra.mxu0 0.0
      %2366 = vmatprep.subr.mxu0 0.0
      %2367 = vmatpush2.msra.mxu0 0.0
      %2368 = vmatprep.subr.mxu0 0.0
      %2369 = vmatpush2.msra.mxu0 0.0
      %2370 = vmatprep.subr.mxu0 0.0
      %2371 = vmatpush2.msra.mxu0 0.0
      %2372 = vmatprep.subr.mxu0 0.0
      %2373 = vmatpush2.msra.mxu0 0.0
      %2374 = vmatprep.subr.mxu0 0.0
      %2375 = vmatpush2.msra.mxu0 0.0
      %2376 = vmatprep.subr.mxu0 0.0
      %2377 = vmatpush2.msra.mxu0 0.0
      %2378 = vmatprep.subr.mxu0 0.0
      %2379 = vmatpush2.msra.mxu0 0.0
      %2380 = vmatprep.subr.mxu0 0.0
      %2381 = vmatpush2.msra.mxu0 0.0
      %2382 = vmatprep.subr.mxu0 0.0
      %2383 = vmatpush2.msra.mxu0 0.0
      %2384 = vmatprep.subr.mxu0 0.0
      %2385 = vmatpush2.msra.mxu0 0.0
      %2386 = vmatprep.subr.mxu0 0.0
      %2387 = vmatpush2.msra.mxu0 0.0
      %2388 = vmatprep.subr.mxu0 0.0
      %2389 = vmatpush2.msra.mxu0 0.0
      %2390 = vmatprep.subr.mxu0 0.0
      %2391 = vmatpush2.msra.mxu0 0.0
      %2392 = vmatprep.subr.mxu0 0.0
      %2393 = vmatpush2.msra.mxu0 0.0
      %2394 = vmatprep.mubr.f32.mxu0 0.0
      %2395 = vmatmul.mubr.f32.gmra.mxu0 %v426
      %v2396 = vpop.f32.mrf.mxu0
      %v2397 = vadd.f32 %v2325, %v2396
      %v2398 = vpop.f32.mrf.mxu0
      %2399 = vmatprep.mubr.f32.mxu0 0.0
      %2400 = vmatmul.mubr.f32.gmra.mxu0 %v432
      %v2401 = vpop.f32.mrf.mxu0
      %v2402 = vadd.f32 %v2325, %v2401
      %v2403 = vpop.f32.mrf.mxu0
      %2404 = vmatprep.mubr.f32.mxu0 0.0
      %2405 = vmatmul.mubr.f32.gmra.mxu0 %v438
      %v2406 = vpop.f32.mrf.mxu0
      %v2407 = vadd.f32 %v2325, %v2406
      %v2408 = vpop.f32.mrf.mxu0
      %2409 = vmatprep.mubr.f32.mxu0 0.0
      %2410 = vmatmul.mubr.f32.gmra.mxu0 %v444
      %v2411 = vpop.f32.mrf.mxu0
      %v2412 = vadd.f32 %v2325, %v2411
      %v2413 = vpop.f32.mrf.mxu0
      %2414 = vmatprep.mubr.f32.mxu0 0.0
      %2415 = vmatmul.mubr.f32.gmra.mxu0 %v450
      %v2416 = vpop.f32.mrf.mxu0
      %v2417 = vadd.f32 %v2325, %v2416
      %v2418 = vpop.f32.mrf.mxu0
      %2419 = vmatprep.mubr.f32.mxu0 0.0
      %2420 = vmatmul.mubr.f32.gmra.mxu0 %v456
      %v2421 = vpop.f32.mrf.mxu0
      %v2422 = vadd.f32 %v2325, %v2421
      %v2423 = vpop.f32.mrf.mxu0
      %2424 = vmatprep.mubr.f32.mxu0 0.0
      %2425 = vmatmul.mubr.f32.gmra.mxu0 %v462
      %v2426 = vpop.f32.mrf.mxu0
      %v2427 = vadd.f32 %v2325, %v2426
      %v2428 = vpop.f32.mrf.mxu0
      %2429 = vmatprep.mubr.f32.mxu0 0.0
      %2430 = vmatmul.mubr.f32.gmra.mxu0 %v468
      %v2431 = vpop.f32.mrf.mxu0
      %v2432 = vadd.f32 %v2325, %v2431
      %v2433 = vpop.f32.mrf.mxu0
      %2434 = vdwg.mxu0
      %v2435 = vadd.f32 %v2311, %v2397
      %v2436 = vadd.f32 %v2312, %v2402
      %v2437 = vadd.f32 %v2313, %v2407
      %v2438 = vadd.f32 %v2314, %v2412
      %v2439 = vadd.f32 %v2315, %v2417
      %v2440 = vadd.f32 %v2316, %v2422
      %v2441 = vadd.f32 %v2317, %v2427
      %v2442 = vadd.f32 %v2318, %v2432
      %vm2443 = vcmask 130048
      %2444 = vst.msk [vmem:[%s332] sm:$0xff] %vm2443, %v2435
      %2445 = vst.msk [vmem:[%s332 + $0x8] sm:$0xff] %vm2443, %v2436
      %2446 = vst.msk [vmem:[%s332 + $0x10] sm:$0xff] %vm2443, %v2437
      %2447 = vst.msk [vmem:[%s332 + $0x18] sm:$0xff] %vm2443, %v2438
      %2448 = vst.msk [vmem:[%s332 + $0x20] sm:$0xff] %vm2443, %v2439
      %2449 = vst.msk [vmem:[%s332 + $0x28] sm:$0xff] %vm2443, %v2440
      %2450 = vst.msk [vmem:[%s332 + $0x30] sm:$0xff] %vm2443, %v2441
      %2451 = vst.msk [vmem:[%s332 + $0x38] sm:$0xff] %vm2443, %v2442
      %p2452 = scmp.lt.s32.totalorder %s20, 1
      %s2453 = scalar_select %p2452, %s20, 1
      %s2454 = smul.addr %s2453, 8
      %s2455 = smul.addr %s2454, 8
      %s2456 = scalar_lea.vmem %s9, %s2455
      // Predicated region
      $region57: #{tpu_custom_call.1} parent=55 // pred_check
        %p2457 = pneg %p232
      $region58: #{tpu_custom_call.1} parent=55 // pred_check_branch
        %2459 = sbr.rel (%p2457) target = $region60
      $region59: #{tpu_custom_call.1} parent=55 // pred_region
        _
      $region60: #{tpu_custom_call.1} parent=55 // pred_fallthru
        _
    $region56: #{tpu_custom_call.1} parent=5 // pred_fallthru
      _
    %p2460 = scmp.le.s32.totalorder 2, %s15
    // Predicated region
    $region61: #{tpu_custom_call.1} parent=5 // pred_check
      %p2461 = pneg %p2460
    $region62: #{tpu_custom_call.1} parent=5 // pred_check_branch
      %2463 = sbr.rel (%p2461) target = $region64
    $region63: #{tpu_custom_call.1} parent=5 // pred_region
      %s2464 = ssub.s32 %s15, 2
      // Predicated region
      $region65: #{tpu_custom_call.1} parent=63 // pred_check
        %p2465 = pneg %p238
      $region66: #{tpu_custom_call.1} parent=63 // pred_check_branch
        %2467 = sbr.rel (%p2465) target = $region68
      $region67: #{tpu_custom_call.1} parent=63 // pred_region
        %p2468 = scmp.lt.s32.totalorder %s21, 1
        %s2469 = scalar_select %p2468, %s21, 1
        %s2470 = smul.addr %s2469, 8
        %s2471 = smul.addr %s2470, 8
        %s2472 = scalar_lea.vmem %s9, %s2471
      $region68: #{tpu_custom_call.1} parent=63 // pred_fallthru
        _
    $region64: #{tpu_custom_call.1} parent=5 // pred_fallthru
      _
  $region6: #{tpu_custom_call.1} parent=0 // loop_footer
    %s19 = sadd.s32 1, %s15
  $region7: #{tpu_custom_call.1} parent=0 // loop_footer_branch
    %14 = sbr.rel target = $region3
  $region8: #{tpu_custom_call.1} parent=0 // loop_exit
    _

</llo_original>
